<compile_context>
chip_gen: v7x
topology: tpu7x:2x2x1
jax: 0.10.0
libtpu: 0.0.40
codegen_flags: <defaults>
</compile_context>

<pallas_src>
import functools

import numpy as np

import jax
import jax.numpy as jnp
from jax.experimental import pallas as pl
from jax.experimental.pallas import tpu as pltpu


def _round_up(x, m):
    return ((x + m - 1) // m) * m


def _build_layout_mats(num_heads, head_dim):
    """Constant 0/1 matrices encoding all head bookkeeping as MXU matmuls.

    Packings (D = H*Dh, HD = H*D):
      scores   s[t, i*Dh + j]         (j < H real, j >= H padding columns)
      wide #1  w  = j*D + i*Dh + d    (slab index j: the q operand is a plain lane-tile)
      wide #2  w2 = i*D + j*Dh + d    (slab index i: the v operand is a plain lane-tile)
    """
    H, Dh = num_heads, head_dim
    D = H * Dh
    HD = H * D
    rk = np.zeros((D, HD), np.float32)    # k[t, j*Dh+d]        -> kw[t, w]
    bs = np.zeros((HD, D), np.float32)    # sum_d prod[t, w]    -> s[t, i*Dh+j]
    gs = np.zeros((D, D), np.float32)     # sum_j p[t, i*Dh+j]  -> denom[t, i*Dh+d]
    rp = np.zeros((D, HD), np.float32)    # p[t, i*Dh+j]        -> pw[t, w2]
    sj = np.zeros((HD, D), np.float32)    # sum_j wide2[t, w2]  -> o[t, i*Dh+d]
    for i in range(H):
        for j in range(H):
            for d in range(Dh):
                w = j * D + i * Dh + d
                w2 = i * D + j * Dh + d
                rk[j * Dh + d, w] = 1.0
                bs[w, i * Dh + j] = 1.0
                gs[i * Dh + j, i * Dh + d] = 1.0
                rp[i * Dh + j, w2] = 1.0
                sj[w2, i * Dh + d] = 1.0
    return rk, bs, gs, rp, sj


def _flash_attn_kernel(x_ref, wqkv_ref, rk_ref, bs_ref, gs_ref, rp_ref, sj_ref,
                       wo_ref, o_ref, *, num_heads, head_dim):
    """One tile of T tokens: fused QKV proj + head-axis attention + out proj."""
    H, Dh = num_heads, head_dim
    D = H * Dh
    f32 = jnp.float32
    bf16 = jnp.bfloat16
    T = x_ref.shape[0]

    # Fused q/k/v projection (bf16 MXU inputs, f32 accumulation); 1/sqrt(Dh) is
    # folded into the q columns of wqkv.  Cast once - every consumer is bf16.
    qkv = jnp.dot(x_ref[...], wqkv_ref[...],
                  preferred_element_type=f32).astype(bf16)                    # (T, 3D)
    q = qkv[:, 0:D]
    k = qkv[:, D:2 * D]
    v = qkv[:, 2 * D:3 * D]

    # --- scores -------------------------------------------------------------
    # kw[t, j*D + i*Dh + d] = k[t, j*Dh + d]  (head-j group broadcast over i slots).
    kw = jnp.dot(k, rk_ref[...], preferred_element_type=f32).astype(bf16)     # (T, H*D)
    # prod[t, j*D + i*Dh + d] = q[t, i*Dh+d] * k[t, j*Dh+d]; the q side of every
    # slab j is just q, so only lane-aligned (multiple-of-128) slices/concat.
    prod = jnp.concatenate([q * kw[:, j * D:(j + 1) * D] for j in range(H)],
                           axis=-1)                                           # (T, H*D)
    # s[t, i*Dh + j] = sum_d prod[t, j*D + i*Dh + d]   (scale already in q).
    s = jnp.dot(prod, bs_ref[...], preferred_element_type=f32)                # (T, D)

    # Mask the Dh-H padding columns of each group (built on the fly, nothing
    # held live across the kernel).
    lane = jax.lax.broadcasted_iota(jnp.int32, (T, D), 1)
    s = jnp.where((lane % Dh) < H, s, f32(-1e30))

    # --- softmax over each token's H heads -----------------------------------
    # The per-token (full-row) max is a mathematically exact shift for every
    # head group of that token; padding columns are -1e30 so they never win.
    m = jnp.max(s, axis=-1, keepdims=True)
    p = jnp.exp(s - m)                                                        # (T, D) f32
    p16 = p.astype(bf16)
    # Denominator broadcast back over each group's Dh lanes.
    denom = jnp.dot(p16, gs_ref[...], preferred_element_type=f32)             # (T, D)

    # --- probability-weighted head mixture -----------------------------------
    # pw[t, i*D + j*Dh + d] = p[t, i*Dh + j]
    pw = jnp.dot(p16, rp_ref[...], preferred_element_type=f32).astype(bf16)   # (T, H*D)
    # wide2[t, i*D + j*Dh + d] = p[t,i,j] * v[t, j*Dh + d]; the v side of every
    # slab i is just v - again no relayout.
    wide2 = jnp.concatenate([pw[:, i * D:(i + 1) * D] * v for i in range(H)],
                            axis=-1)                                          # (T, H*D)
    o_un = jnp.dot(wide2, sj_ref[...], preferred_element_type=f32)            # (T, D)

    # Normalize (EUP approx reciprocal) and apply the output projection.
    o_n = o_un * pl.reciprocal(denom, approx=True)
    o_ref[...] = jnp.dot(o_n.astype(bf16), wo_ref[...],
                         preferred_element_type=f32).astype(o_ref.dtype)


def flash_attention_forward(query, wq, wk, wv, wo, *, num_heads, max_tile=1024):
    """query: (B, S, D) f32; w*: (D, D) PyTorch-layout Linear weights (out, in)."""
    B, S, D = query.shape
    H = num_heads
    assert D % H == 0, "dim must be divisible by num_heads"
    Dh = D // H
    assert H <= Dh, "kernel score packing assumes num_heads <= head_dim"
    assert D % 128 == 0, "kernel assumes dim is a multiple of the 128-lane width"
    scale = float(Dh) ** -0.5
    HD = H * D

    # Token tile: >=2 grid steps for moderate/large problems so the 'parallel'
    # grid axis can shard across both v7x TensorCores; single small tile otherwise.
    N = B * S
    n8 = _round_up(max(N, 1), 8)
    if n8 < 256:
        T = n8
    else:
        T = min(max_tile, _round_up((n8 + 1) // 2, 8))
    N_pad = _round_up(N, T)

    x2 = query.reshape(N, D)
    if N_pad != N:
        # Padded rows are zeros: their softmax is uniform over zero values, so the
        # padded outputs are zero and are sliced off below.
        x2 = jnp.pad(x2, ((0, N_pad - N), (0, 0)))
    x2 = x2.astype(jnp.bfloat16)

    # Fused, pre-transposed, scale-folded projection weights (bf16 MXU inputs).
    wqkv = jnp.concatenate(
        [wq.T.astype(jnp.float32) * scale,
         wk.T.astype(jnp.float32),
         wv.T.astype(jnp.float32)], axis=1).astype(jnp.bfloat16)              # (D, 3D)
    woT = wo.T.astype(jnp.bfloat16)                                           # (D, D)

    rk, bs, gs, rp, sj = _build_layout_mats(H, Dh)
    rk = jnp.asarray(rk, jnp.bfloat16)
    bs = jnp.asarray(bs, jnp.bfloat16)
    gs = jnp.asarray(gs, jnp.bfloat16)
    rp = jnp.asarray(rp, jnp.bfloat16)
    sj = jnp.asarray(sj, jnp.bfloat16)

    kernel = functools.partial(_flash_attn_kernel, num_heads=H, head_dim=Dh)

    out = pl.pallas_call(
        kernel,
        out_shape=jax.ShapeDtypeStruct((N_pad, D), jnp.float32),
        grid=(N_pad // T,),
        in_specs=[
            pl.BlockSpec((T, D), lambda i: (i, 0)),          # x tile (bf16)
            pl.BlockSpec((D, 3 * D), lambda i: (0, 0)),      # fused Wqkv^T (scale folded)
            pl.BlockSpec((D, HD), lambda i: (0, 0)),         # rk: k group broadcast
            pl.BlockSpec((HD, D), lambda i: (0, 0)),         # bs: score block-sum
            pl.BlockSpec((D, D), lambda i: (0, 0)),          # gs: softmax denom broadcast
            pl.BlockSpec((D, HD), lambda i: (0, 0)),         # rp: p expansion
            pl.BlockSpec((HD, D), lambda i: (0, 0)),         # sj: output block-sum
            pl.BlockSpec((D, D), lambda i: (0, 0)),          # Wo^T
        ],
        out_specs=pl.BlockSpec((T, D), lambda i: (i, 0)),
        compiler_params=pltpu.CompilerParams(
            dimension_semantics=("parallel",),
            vmem_limit_bytes=32 * 1024 * 1024),
    )(x2, wqkv, rk, bs, gs, rp, sj, woT)

    return out[:N].reshape(B, S, D)


def _reference(query, wq, wk, wv, wo, *, num_heads):
    """Pure-JAX f32 reference reproducing the PyTorch module (eval, no mask)."""
    B, S, D = query.shape
    H = num_heads
    Dh = D // H
    q = query @ wq.T
    k = query @ wk.T
    v = query @ wv.T
    q = q.reshape(B, S, H, Dh)
    k = k.reshape(B, S, H, Dh)
    v = v.reshape(B, S, H, Dh)
    scale = float(Dh) ** -0.5
    s = jnp.einsum('bsid,bsjd->bsij', q, k) * scale      # attention over the head axis
    p = jax.nn.softmax(s, axis=-1)
    o = jnp.einsum('bsij,bsjd->bsid', p, v).reshape(B, S, D)
    return o @ wo.T


def _xavier_uniform(key, shape, gain):
    fan_in, fan_out = shape[1], shape[0]
    a = gain * (6.0 / (fan_in + fan_out)) ** 0.5
    return jax.random.uniform(key, shape, jnp.float32, minval=-a, maxval=a)


if __name__ == "__main__":
    # Small shapes consistent with the module: dim divisible by num_heads=8.
    B, S, D, H = 2, 8, 128, 8

    root = jax.random.PRNGKey(0)
    kx, kq, kk, kv, ko = jax.random.split(root, 5)

    query = jax.random.normal(kx, (B, S, D), jnp.float32)
    # nn.init.xavier_uniform_(proj.weight, gain=0.1) on (D, D) Linear weights.
    wq = _xavier_uniform(kq, (D, D), gain=0.1)
    wk = _xavier_uniform(kk, (D, D), gain=0.1)
    wv = _xavier_uniform(kv, (D, D), gain=0.1)
    wo = _xavier_uniform(ko, (D, D), gain=0.1)

    out = flash_attention_forward(query, wq, wk, wv, wo, num_heads=H)
    out = jax.block_until_ready(out)

    ref = _reference(query, wq, wk, wv, wo, num_heads=H)
    assert out.shape == (B, S, D)
    max_err = float(jnp.max(jnp.abs(out - ref)))
    # bf16 matmul inputs (f32 accumulation) -> tolerance loosened vs f32 ref.
    assert jnp.allclose(out, ref, rtol=2e-2, atol=2e-3), \
        f"mismatch vs reference (max abs err {max_err:.3e})"

    print("KERNEL_OK")
</pallas_src>

<mosaic_0001>
module attributes {stable_mosaic.version = 11 : i64} {
  func.func @_flash_attn_kernel(%arg0: i32, %arg1: memref<16x128xbf16, #tpu.memory_space<vmem>>, %arg2: memref<128x384xbf16, #tpu.memory_space<vmem>>, %arg3: memref<128x1024xbf16, #tpu.memory_space<vmem>>, %arg4: memref<1024x128xbf16, #tpu.memory_space<vmem>>, %arg5: memref<128x128xbf16, #tpu.memory_space<vmem>>, %arg6: memref<128x1024xbf16, #tpu.memory_space<vmem>>, %arg7: memref<1024x128xbf16, #tpu.memory_space<vmem>>, %arg8: memref<128x128xbf16, #tpu.memory_space<vmem>>, %arg9: memref<16x128xf32, #tpu.memory_space<vmem>>) attributes {dimension_semantics = [#tpu.dimension_semantics<parallel>], iteration_bounds = array<i64: 1>, scalar_prefetch = 0 : i64, scratch_operands = 0 : i64, tpu.core_type = #tpu.core_type<tc>, window_params = [{transform_indices = @transform_0, window_bounds = array<i64: 16, 128>}, {pipeline_mode = #tpu.pipeline_mode<synchronous>, transform_indices = @transform_1, window_bounds = array<i64: 128, 384>}, {pipeline_mode = #tpu.pipeline_mode<synchronous>, transform_indices = @transform_2, window_bounds = array<i64: 128, 1024>}, {pipeline_mode = #tpu.pipeline_mode<synchronous>, transform_indices = @transform_3, window_bounds = array<i64: 1024, 128>}, {pipeline_mode = #tpu.pipeline_mode<synchronous>, transform_indices = @transform_4, window_bounds = array<i64: 128, 128>}, {pipeline_mode = #tpu.pipeline_mode<synchronous>, transform_indices = @transform_5, window_bounds = array<i64: 128, 1024>}, {pipeline_mode = #tpu.pipeline_mode<synchronous>, transform_indices = @transform_6, window_bounds = array<i64: 1024, 128>}, {pipeline_mode = #tpu.pipeline_mode<synchronous>, transform_indices = @transform_7, window_bounds = array<i64: 128, 128>}, {transform_indices = @transform_8, window_bounds = array<i64: 16, 128>}]} {
    %c0 = arith.constant 0 : index
    %c0_0 = arith.constant 0 : index
    %0 = vector.load %arg1[%c0, %c0_0] : memref<16x128xbf16, #tpu.memory_space<vmem>>, vector<16x128xbf16>
    %c0_1 = arith.constant 0 : index
    %c0_2 = arith.constant 0 : index
    %1 = vector.load %arg2[%c0_1, %c0_2] : memref<128x384xbf16, #tpu.memory_space<vmem>>, vector<128x384xbf16>
    %cst = arith.constant dense<0.000000e+00> : vector<16x384xf32>
    %2 = tpu.matmul %0, %1, %cst {dimension_numbers = #tpu.dot_dimension_numbers<[1], [0], [0], [1], [0, 0, 1, 1], [], []>} : vector<16x128xbf16>, vector<128x384xbf16>, vector<16x384xf32> -> vector<16x384xf32>
    %3 = arith.truncf %2 : vector<16x384xf32> to vector<16x384xbf16>
    %4 = vector.extract_strided_slice %3 {offsets = [0, 0], sizes = [16, 128], strides = [1, 1]} : vector<16x384xbf16> to vector<16x128xbf16>
    %5 = vector.extract_strided_slice %3 {offsets = [0, 128], sizes = [16, 128], strides = [1, 1]} : vector<16x384xbf16> to vector<16x128xbf16>
    %6 = vector.extract_strided_slice %3 {offsets = [0, 256], sizes = [16, 128], strides = [1, 1]} : vector<16x384xbf16> to vector<16x128xbf16>
    %c0_3 = arith.constant 0 : index
    %c0_4 = arith.constant 0 : index
    %7 = vector.load %arg3[%c0_3, %c0_4] : memref<128x1024xbf16, #tpu.memory_space<vmem>>, vector<128x1024xbf16>
    %cst_5 = arith.constant dense<0.000000e+00> : vector<16x1024xf32>
    %8 = tpu.matmul %5, %7, %cst_5 {dimension_numbers = #tpu.dot_dimension_numbers<[1], [0], [0], [1], [0, 0, 1, 1], [], []>} : vector<16x128xbf16>, vector<128x1024xbf16>, vector<16x1024xf32> -> vector<16x1024xf32>
    %9 = arith.truncf %8 : vector<16x1024xf32> to vector<16x1024xbf16>
    %10 = vector.extract_strided_slice %9 {offsets = [0, 0], sizes = [16, 128], strides = [1, 1]} : vector<16x1024xbf16> to vector<16x128xbf16>
    %11 = arith.mulf %4, %10 : vector<16x128xbf16>
    %12 = vector.extract_strided_slice %9 {offsets = [0, 128], sizes = [16, 128], strides = [1, 1]} : vector<16x1024xbf16> to vector<16x128xbf16>
    %13 = arith.mulf %4, %12 : vector<16x128xbf16>
    %14 = vector.extract_strided_slice %9 {offsets = [0, 256], sizes = [16, 128], strides = [1, 1]} : vector<16x1024xbf16> to vector<16x128xbf16>
    %15 = arith.mulf %4, %14 : vector<16x128xbf16>
    %16 = vector.extract_strided_slice %9 {offsets = [0, 384], sizes = [16, 128], strides = [1, 1]} : vector<16x1024xbf16> to vector<16x128xbf16>
    %17 = arith.mulf %4, %16 : vector<16x128xbf16>
    %18 = vector.extract_strided_slice %9 {offsets = [0, 512], sizes = [16, 128], strides = [1, 1]} : vector<16x1024xbf16> to vector<16x128xbf16>
    %19 = arith.mulf %4, %18 : vector<16x128xbf16>
    %20 = vector.extract_strided_slice %9 {offsets = [0, 640], sizes = [16, 128], strides = [1, 1]} : vector<16x1024xbf16> to vector<16x128xbf16>
    %21 = arith.mulf %4, %20 : vector<16x128xbf16>
    %22 = vector.extract_strided_slice %9 {offsets = [0, 768], sizes = [16, 128], strides = [1, 1]} : vector<16x1024xbf16> to vector<16x128xbf16>
    %23 = arith.mulf %4, %22 : vector<16x128xbf16>
    %24 = vector.extract_strided_slice %9 {offsets = [0, 896], sizes = [16, 128], strides = [1, 1]} : vector<16x1024xbf16> to vector<16x128xbf16>
    %25 = arith.mulf %4, %24 : vector<16x128xbf16>
    %26 = tpu.concatenate %11, %13, %15, %17, %19, %21, %23, %25 in 1 : vector<16x128xbf16>, vector<16x128xbf16>, vector<16x128xbf16>, vector<16x128xbf16>, vector<16x128xbf16>, vector<16x128xbf16>, vector<16x128xbf16>, vector<16x128xbf16> -> vector<16x1024xbf16>
    %c0_6 = arith.constant 0 : index
    %c0_7 = arith.constant 0 : index
    %27 = vector.load %arg4[%c0_6, %c0_7] : memref<1024x128xbf16, #tpu.memory_space<vmem>>, vector<1024x128xbf16>
    %cst_8 = arith.constant dense<0.000000e+00> : vector<16x128xf32>
    %28 = tpu.matmul %26, %27, %cst_8 {dimension_numbers = #tpu.dot_dimension_numbers<[1], [0], [0], [1], [0, 0, 1, 1], [], []>} : vector<16x1024xbf16>, vector<1024x128xbf16>, vector<16x128xf32> -> vector<16x128xf32>
    %29 = tpu.iota {dimensions = array<i32: 1>} : vector<16x128xi32>
    %c16_i32 = arith.constant 16 : i32
    %c0_i32 = arith.constant 0 : i32
    %30 = arith.cmpi eq, %c16_i32, %c0_i32 : i32
    %c1_i32 = arith.constant 1 : i32
    %31 = arith.select %30, %c1_i32, %c16_i32 : i32
    %32 = vector.broadcast %31 : i32 to vector<16x128xi32>
    %33 = arith.remsi %29, %32 : vector<16x128xi32>
    %c0_i32_9 = arith.constant 0 : i32
    %34 = vector.broadcast %c0_i32_9 : i32 to vector<16x128xi32>
    %35 = arith.cmpi ne, %33, %34 : vector<16x128xi32>
    %c0_i32_10 = arith.constant 0 : i32
    %36 = vector.broadcast %c0_i32_10 : i32 to vector<16x128xi32>
    %37 = arith.cmpi slt, %33, %36 : vector<16x128xi32>
    %c0_i32_11 = arith.constant 0 : i32
    %38 = arith.cmpi slt, %31, %c0_i32_11 : i32
    %39 = vector.broadcast %38 : i1 to vector<16x128xi1>
    %40 = vector.broadcast %39 : vector<16x128xi1> to vector<16x128xi1>
    %41 = arith.xori %37, %40 : vector<16x128xi1>
    %42 = arith.andi %41, %35 : vector<16x128xi1>
    %43 = vector.broadcast %31 : i32 to vector<16x128xi32>
    %44 = arith.addi %33, %43 : vector<16x128xi32>
    %45 = arith.select %42, %44, %33 : vector<16x128xi1>, vector<16x128xi32>
    %c8_i32 = arith.constant 8 : i32
    %46 = vector.broadcast %c8_i32 : i32 to vector<16x128xi32>
    %47 = arith.cmpi slt, %45, %46 : vector<16x128xi32>
    %cst_12 = arith.constant -1.000000e+30 : f32
    %48 = vector.broadcast %cst_12 : f32 to vector<16x128xf32>
    %49 = arith.select %47, %28, %48 : vector<16x128xi1>, vector<16x128xf32>
    %cst_13 = arith.constant dense<0xFF800000> : vector<16xf32>
    %50 = vector.multi_reduction <maximumf>, %49, %cst_13 [1] : vector<16x128xf32> to vector<16xf32>
    %51 = vector.shape_cast %50 : vector<16xf32> to vector<16x1xf32>
    %52 = vector.broadcast %51 : vector<16x1xf32> to vector<16x128xf32>
    %53 = arith.subf %49, %52 : vector<16x128xf32>
    %54 = math.exp %53 : vector<16x128xf32>
    %55 = arith.truncf %54 : vector<16x128xf32> to vector<16x128xbf16>
    %c0_14 = arith.constant 0 : index
    %c0_15 = arith.constant 0 : index
    %56 = vector.load %arg5[%c0_14, %c0_15] : memref<128x128xbf16, #tpu.memory_space<vmem>>, vector<128x128xbf16>
    %cst_16 = arith.constant dense<0.000000e+00> : vector<16x128xf32>
    %57 = tpu.matmul %55, %56, %cst_16 {dimension_numbers = #tpu.dot_dimension_numbers<[1], [0], [0], [1], [0, 0, 1, 1], [], []>} : vector<16x128xbf16>, vector<128x128xbf16>, vector<16x128xf32> -> vector<16x128xf32>
    %c0_17 = arith.constant 0 : index
    %c0_18 = arith.constant 0 : index
    %58 = vector.load %arg6[%c0_17, %c0_18] : memref<128x1024xbf16, #tpu.memory_space<vmem>>, vector<128x1024xbf16>
    %cst_19 = arith.constant dense<0.000000e+00> : vector<16x1024xf32>
    %59 = tpu.matmul %55, %58, %cst_19 {dimension_numbers = #tpu.dot_dimension_numbers<[1], [0], [0], [1], [0, 0, 1, 1], [], []>} : vector<16x128xbf16>, vector<128x1024xbf16>, vector<16x1024xf32> -> vector<16x1024xf32>
    %60 = arith.truncf %59 : vector<16x1024xf32> to vector<16x1024xbf16>
    %61 = vector.extract_strided_slice %60 {offsets = [0, 0], sizes = [16, 128], strides = [1, 1]} : vector<16x1024xbf16> to vector<16x128xbf16>
    %62 = arith.mulf %61, %6 : vector<16x128xbf16>
    %63 = vector.extract_strided_slice %60 {offsets = [0, 128], sizes = [16, 128], strides = [1, 1]} : vector<16x1024xbf16> to vector<16x128xbf16>
    %64 = arith.mulf %63, %6 : vector<16x128xbf16>
    %65 = vector.extract_strided_slice %60 {offsets = [0, 256], sizes = [16, 128], strides = [1, 1]} : vector<16x1024xbf16> to vector<16x128xbf16>
    %66 = arith.mulf %65, %6 : vector<16x128xbf16>
    %67 = vector.extract_strided_slice %60 {offsets = [0, 384], sizes = [16, 128], strides = [1, 1]} : vector<16x1024xbf16> to vector<16x128xbf16>
    %68 = arith.mulf %67, %6 : vector<16x128xbf16>
    %69 = vector.extract_strided_slice %60 {offsets = [0, 512], sizes = [16, 128], strides = [1, 1]} : vector<16x1024xbf16> to vector<16x128xbf16>
    %70 = arith.mulf %69, %6 : vector<16x128xbf16>
    %71 = vector.extract_strided_slice %60 {offsets = [0, 640], sizes = [16, 128], strides = [1, 1]} : vector<16x1024xbf16> to vector<16x128xbf16>
    %72 = arith.mulf %71, %6 : vector<16x128xbf16>
    %73 = vector.extract_strided_slice %60 {offsets = [0, 768], sizes = [16, 128], strides = [1, 1]} : vector<16x1024xbf16> to vector<16x128xbf16>
    %74 = arith.mulf %73, %6 : vector<16x128xbf16>
    %75 = vector.extract_strided_slice %60 {offsets = [0, 896], sizes = [16, 128], strides = [1, 1]} : vector<16x1024xbf16> to vector<16x128xbf16>
    %76 = arith.mulf %75, %6 : vector<16x128xbf16>
    %77 = tpu.concatenate %62, %64, %66, %68, %70, %72, %74, %76 in 1 : vector<16x128xbf16>, vector<16x128xbf16>, vector<16x128xbf16>, vector<16x128xbf16>, vector<16x128xbf16>, vector<16x128xbf16>, vector<16x128xbf16>, vector<16x128xbf16> -> vector<16x1024xbf16>
    %c0_20 = arith.constant 0 : index
    %c0_21 = arith.constant 0 : index
    %78 = vector.load %arg7[%c0_20, %c0_21] : memref<1024x128xbf16, #tpu.memory_space<vmem>>, vector<1024x128xbf16>
    %cst_22 = arith.constant dense<0.000000e+00> : vector<16x128xf32>
    %79 = tpu.matmul %77, %78, %cst_22 {dimension_numbers = #tpu.dot_dimension_numbers<[1], [0], [0], [1], [0, 0, 1, 1], [], []>} : vector<16x1024xbf16>, vector<1024x128xbf16>, vector<16x128xf32> -> vector<16x128xf32>
    %80 = tpu.reciprocal %57 {approx = true} : vector<16x128xf32> -> vector<16x128xf32>
    %81 = arith.mulf %79, %80 : vector<16x128xf32>
    %82 = arith.truncf %81 : vector<16x128xf32> to vector<16x128xbf16>
    %c0_23 = arith.constant 0 : index
    %c0_24 = arith.constant 0 : index
    %83 = vector.load %arg8[%c0_23, %c0_24] : memref<128x128xbf16, #tpu.memory_space<vmem>>, vector<128x128xbf16>
    %cst_25 = arith.constant dense<0.000000e+00> : vector<16x128xf32>
    %84 = tpu.matmul %82, %83, %cst_25 {dimension_numbers = #tpu.dot_dimension_numbers<[1], [0], [0], [1], [0, 0, 1, 1], [], []>} : vector<16x128xbf16>, vector<128x128xbf16>, vector<16x128xf32> -> vector<16x128xf32>
    %c0_26 = arith.constant 0 : index
    %c0_27 = arith.constant 0 : index
    %85 = vector.load %arg9[%c0_26, %c0_27] : memref<16x128xf32, #tpu.memory_space<vmem>>, vector<16x128xf32>
    tpu.vector_store %arg9[%c0_26, %c0_27], %84 {strides = array<i32>} : memref<16x128xf32, #tpu.memory_space<vmem>>, vector<16x128xf32>,
    return
  }
  func.func @transform_0(%arg0: i32) -> (i32, i32) {
    %c0_i32 = arith.constant 0 : i32
    %c0_i32_0 = arith.constant 0 : i32
    return %arg0, %c0_i32 : i32, i32
  }
  func.func @transform_1(%arg0: i32) -> (i32, i32) {
    %c0_i32 = arith.constant 0 : i32
    %c0_i32_0 = arith.constant 0 : i32
    %c0_i32_1 = arith.constant 0 : i32
    return %c0_i32, %c0_i32_0 : i32, i32
  }
  func.func @transform_2(%arg0: i32) -> (i32, i32) {
    %c0_i32 = arith.constant 0 : i32
    %c0_i32_0 = arith.constant 0 : i32
    %c0_i32_1 = arith.constant 0 : i32
    return %c0_i32, %c0_i32_0 : i32, i32
  }
  func.func @transform_3(%arg0: i32) -> (i32, i32) {
    %c0_i32 = arith.constant 0 : i32
    %c0_i32_0 = arith.constant 0 : i32
    %c0_i32_1 = arith.constant 0 : i32
    return %c0_i32, %c0_i32_0 : i32, i32
  }
  func.func @transform_4(%arg0: i32) -> (i32, i32) {
    %c0_i32 = arith.constant 0 : i32
    %c0_i32_0 = arith.constant 0 : i32
    %c0_i32_1 = arith.constant 0 : i32
    return %c0_i32, %c0_i32_0 : i32, i32
  }
  func.func @transform_5(%arg0: i32) -> (i32, i32) {
    %c0_i32 = arith.constant 0 : i32
    %c0_i32_0 = arith.constant 0 : i32
    %c0_i32_1 = arith.constant 0 : i32
    return %c0_i32, %c0_i32_0 : i32, i32
  }
  func.func @transform_6(%arg0: i32) -> (i32, i32) {
    %c0_i32 = arith.constant 0 : i32
    %c0_i32_0 = arith.constant 0 : i32
    %c0_i32_1 = arith.constant 0 : i32
    return %c0_i32, %c0_i32_0 : i32, i32
  }
  func.func @transform_7(%arg0: i32) -> (i32, i32) {
    %c0_i32 = arith.constant 0 : i32
    %c0_i32_0 = arith.constant 0 : i32
    %c0_i32_1 = arith.constant 0 : i32
    return %c0_i32, %c0_i32_0 : i32, i32
  }
  func.func @transform_8(%arg0: i32) -> (i32, i32) {
    %c0_i32 = arith.constant 0 : i32
    %c0_i32_0 = arith.constant 0 : i32
    return %arg0, %c0_i32 : i32, i32
  }
}

</mosaic_0001>

<llo_original>
// kernel: tpu_custom_call.1
$region0: #{tpu_custom_call.1}
  #allocation0 [shape = 'u32[]', space=smem, size = 0x4, offset = 0x4, fixed_abs, tag = 'smem constant byte address 0x4 - core index']
  #allocation1 [shape = 'u32[144,128]{1,0:T(1,128)}', space=vmem, size = 0x12000, scoped, tag = 'internal scratch']
  %s0 = inlined_call_operand.hbm [shape: bf16[16,128], index: 0, kind: input, shape index: {}]
  %s1 = inlined_call_operand.hbm [shape: bf16[128,384], index: 1, kind: input, shape index: {}]
  %s2 = inlined_call_operand.hbm [shape: bf16[128,1024], index: 2, kind: input, shape index: {}]
  %s3 = inlined_call_operand.hbm [shape: bf16[1024,128], index: 3, kind: input, shape index: {}]
  %s4 = inlined_call_operand.hbm [shape: bf16[128,128], index: 4, kind: input, shape index: {}]
  %s5 = inlined_call_operand.hbm [shape: bf16[128,1024], index: 5, kind: input, shape index: {}]
  %s6 = inlined_call_operand.hbm [shape: bf16[1024,128], index: 6, kind: input, shape index: {}]
  %s7 = inlined_call_operand.hbm [shape: bf16[128,128], index: 7, kind: input, shape index: {}]
  %s8 = inlined_call_operand.hbm [shape: f32[16,128], index: 8, kind: output, shape index: {}]
  %s9 = sld [smem:[#allocation0]]
  $region74: #{tpu_custom_call.1} parent=0
    _
  %s11 = ssub.s32 1, %s9
  %s12 = scalar_select 0, %s11, %s9
  $region1: #{tpu_custom_call.1} parent=0
    #allocation2 [shape = 'u8[4096]{0}', space=vmem, size = 0x1000, scoped, tag = 'input window, operand 0, single buffered']
    #allocation3 [shape = 's32[1]{0}', space=sflag, size = 0x4, scoped, tag = 'scoped memory for tpu_custom_call.1']
    #allocation4 [shape = 's32[1]{0}', space=sflag, size = 0x4, scoped, tag = 'scoped memory for tpu_custom_call.1']
    #allocation5 [shape = 'u8[98304]{0}', space=vmem, size = 0x18000, scoped, tag = 'input window, operand 1, single buffered']
    #allocation6 [shape = 's32[1]{0}', space=sflag, size = 0x4, scoped, tag = 'scoped memory for tpu_custom_call.1']
    #allocation7 [shape = 'u8[262144]{0}', space=vmem, size = 0x40000, scoped, tag = 'input window, operand 2, single buffered']
    #allocation8 [shape = 'u8[262144]{0}', space=vmem, size = 0x40000, scoped, tag = 'input window, operand 3, single buffered']
    #allocation9 [shape = 's32[1]{0}', space=sflag, size = 0x4, scoped, tag = 'scoped memory for tpu_custom_call.1']
    #allocation10 [shape = 'u8[32768]{0}', space=vmem, size = 0x8000, scoped, tag = 'input window, operand 4, single buffered']
    #allocation11 [shape = 'u8[262144]{0}', space=vmem, size = 0x40000, scoped, tag = 'input window, operand 5, single buffered']
    #allocation12 [shape = 's32[1]{0}', space=sflag, size = 0x4, scoped, tag = 'scoped memory for tpu_custom_call.1']
    #allocation13 [shape = 'u8[262144]{0}', space=vmem, size = 0x40000, scoped, tag = 'input window, operand 6, single buffered']
    #allocation14 [shape = 'u8[32768]{0}', space=vmem, size = 0x8000, scoped, tag = 'input window, operand 7, single buffered']
    #allocation15 [shape = 's32[1]{0}', space=sflag, size = 0x4, scoped, tag = 'scoped memory for tpu_custom_call.1']
    #allocation16 [shape = 'u8[8192]{0}', space=vmem, size = 0x2000, scoped, tag = 'output window, operand 0, single buffered']
    %13 = vsyncpa [#allocation3], 0
    %14 = vsyncpa [#allocation6], 0
    %15 = vsyncpa [#allocation9], 0
    %16 = vsyncpa [#allocation12], 0
    %17 = vsyncpa [#allocation15], 0
    %18 = vsyncpa [#allocation4], 0
    // Predicated region
    $region2: #{tpu_custom_call.1} parent=1 // pred_check
      _
    $region3: #{tpu_custom_call.1} parent=1 // pred_check_branch
      %20 = sbr.rel (0) target = $region5
    $region4: #{tpu_custom_call.1} parent=1 // pred_region
      %s22 = ssub.s32 128, 128
      %23 = vsyncadd [#allocation3], %s22
      %s24 = sshll.u32 [#allocation2], 4
      %s25 = int_to_ptr.vmem [resolvable:$true] %s24
      %30 = dma.hbm_to_vmem [thread:$0]  %s0, 128, %s25, [#allocation3], 64, 64, 4
    $region5: #{tpu_custom_call.1} parent=1 // pred_fallthru
      _
    // Predicated region
    $region6: #{tpu_custom_call.1} parent=1 // pred_check
      _
    $region7: #{tpu_custom_call.1} parent=1 // pred_check_branch
      %32 = sbr.rel (0) target = $region9
    $region8: #{tpu_custom_call.1} parent=1 // pred_region
      %s34 = ssub.s32 3072, 3072
      %35 = vsyncadd [#allocation6], %s34
      %s36 = sshll.u32 [#allocation5], 4
      %s37 = int_to_ptr.vmem [resolvable:$true] %s36
      %42 = dma.hbm_to_vmem [thread:$0]  %s1, 3072, %s37, [#allocation6], 192, 192, 12
    $region9: #{tpu_custom_call.1} parent=1 // pred_fallthru
      _
    // Predicated region
    $region10: #{tpu_custom_call.1} parent=1 // pred_check
      _
    $region11: #{tpu_custom_call.1} parent=1 // pred_check_branch
      %44 = sbr.rel (0) target = $region13
    $region12: #{tpu_custom_call.1} parent=1 // pred_region
      %s46 = ssub.s32 8192, 8192
      %47 = vsyncadd [#allocation6], %s46
      %s48 = sshll.u32 [#allocation7], 4
      %s49 = int_to_ptr.vmem [resolvable:$true] %s48
      %54 = dma.hbm_to_vmem [thread:$0]  %s2, 8192, %s49, [#allocation6], 512, 512, 32
    $region13: #{tpu_custom_call.1} parent=1 // pred_fallthru
      _
    // Predicated region
    $region14: #{tpu_custom_call.1} parent=1 // pred_check
      _
    $region15: #{tpu_custom_call.1} parent=1 // pred_check_branch
      %56 = sbr.rel (0) target = $region17
    $region16: #{tpu_custom_call.1} parent=1 // pred_region
      %s58 = ssub.s32 8192, 8192
      %59 = vsyncadd [#allocation9], %s58
      %s60 = sshll.u32 [#allocation8], 4
      %s61 = int_to_ptr.vmem [resolvable:$true] %s60
      %66 = dma.hbm_to_vmem [thread:$0]  %s3, 8192, %s61, [#allocation9], 64, 64, 4
    $region17: #{tpu_custom_call.1} parent=1 // pred_fallthru
      _
    // Predicated region
    $region18: #{tpu_custom_call.1} parent=1 // pred_check
      _
    $region19: #{tpu_custom_call.1} parent=1 // pred_check_branch
      %68 = sbr.rel (0) target = $region21
    $region20: #{tpu_custom_call.1} parent=1 // pred_region
      %s70 = ssub.s32 1024, 1024
      %71 = vsyncadd [#allocation9], %s70
      %s72 = sshll.u32 [#allocation10], 4
      %s73 = int_to_ptr.vmem [resolvable:$true] %s72
      %78 = dma.hbm_to_vmem [thread:$0]  %s4, 1024, %s73, [#allocation9], 64, 64, 4
    $region21: #{tpu_custom_call.1} parent=1 // pred_fallthru
      _
    // Predicated region
    $region22: #{tpu_custom_call.1} parent=1 // pred_check
      _
    $region23: #{tpu_custom_call.1} parent=1 // pred_check_branch
      %80 = sbr.rel (0) target = $region25
    $region24: #{tpu_custom_call.1} parent=1 // pred_region
      %s82 = ssub.s32 8192, 8192
      %83 = vsyncadd [#allocation12], %s82
      %s84 = sshll.u32 [#allocation11], 4
      %s85 = int_to_ptr.vmem [resolvable:$true] %s84
      %90 = dma.hbm_to_vmem [thread:$0]  %s5, 8192, %s85, [#allocation12], 512, 512, 32
    $region25: #{tpu_custom_call.1} parent=1 // pred_fallthru
      _
    // Predicated region
    $region26: #{tpu_custom_call.1} parent=1 // pred_check
      _
    $region27: #{tpu_custom_call.1} parent=1 // pred_check_branch
      %92 = sbr.rel (0) target = $region29
    $region28: #{tpu_custom_call.1} parent=1 // pred_region
      %s94 = ssub.s32 8192, 8192
      %95 = vsyncadd [#allocation12], %s94
      %s96 = sshll.u32 [#allocation13], 4
      %s97 = int_to_ptr.vmem [resolvable:$true] %s96
      %102 = dma.hbm_to_vmem [thread:$0]  %s6, 8192, %s97, [#allocation12], 64, 64, 4
    $region29: #{tpu_custom_call.1} parent=1 // pred_fallthru
      _
    // Predicated region
    $region30: #{tpu_custom_call.1} parent=1 // pred_check
      _
    $region31: #{tpu_custom_call.1} parent=1 // pred_check_branch
      %104 = sbr.rel (0) target = $region33
    $region32: #{tpu_custom_call.1} parent=1 // pred_region
      %s106 = ssub.s32 1024, 1024
      %107 = vsyncadd [#allocation15], %s106
      %s108 = sshll.u32 [#allocation14], 4
      %s109 = int_to_ptr.vmem [resolvable:$true] %s108
      %114 = dma.hbm_to_vmem [thread:$0]  %s7, 1024, %s109, [#allocation15], 64, 64, 4
    $region33: #{tpu_custom_call.1} parent=1 // pred_fallthru
      _
    // Predicated region
    $region34: #{tpu_custom_call.1} parent=1 // pred_check
      _
    $region35: #{tpu_custom_call.1} parent=1 // pred_check_branch
      %116 = sbr.rel (0) target = $region37
    $region36: #{tpu_custom_call.1} parent=1 // pred_region
      %117 = dma.done [#allocation3], 128
    $region37: #{tpu_custom_call.1} parent=1 // pred_fallthru
      _
    // Predicated region
    $region38: #{tpu_custom_call.1} parent=1 // pred_check
      _
    $region39: #{tpu_custom_call.1} parent=1 // pred_check_branch
      %119 = sbr.rel (0) target = $region41
    $region40: #{tpu_custom_call.1} parent=1 // pred_region
      %120 = dma.done [#allocation6], 3072
    $region41: #{tpu_custom_call.1} parent=1 // pred_fallthru
      _
    // Predicated region
    $region42: #{tpu_custom_call.1} parent=1 // pred_check
      _
    $region43: #{tpu_custom_call.1} parent=1 // pred_check_branch
      %122 = sbr.rel (0) target = $region45
    $region44: #{tpu_custom_call.1} parent=1 // pred_region
      %123 = dma.done [#allocation6], 8192
    $region45: #{tpu_custom_call.1} parent=1 // pred_fallthru
      _
    // Predicated region
    $region46: #{tpu_custom_call.1} parent=1 // pred_check
      _
    $region47: #{tpu_custom_call.1} parent=1 // pred_check_branch
      %125 = sbr.rel (0) target = $region49
    $region48: #{tpu_custom_call.1} parent=1 // pred_region
      %126 = dma.done [#allocation9], 8192
    $region49: #{tpu_custom_call.1} parent=1 // pred_fallthru
      _
    // Predicated region
    $region50: #{tpu_custom_call.1} parent=1 // pred_check
      _
    $region51: #{tpu_custom_call.1} parent=1 // pred_check_branch
      %128 = sbr.rel (0) target = $region53
    $region52: #{tpu_custom_call.1} parent=1 // pred_region
      %129 = dma.done [#allocation9], 1024
    $region53: #{tpu_custom_call.1} parent=1 // pred_fallthru
      _
    // Predicated region
    $region54: #{tpu_custom_call.1} parent=1 // pred_check
      _
    $region55: #{tpu_custom_call.1} parent=1 // pred_check_branch
      %131 = sbr.rel (0) target = $region57
    $region56: #{tpu_custom_call.1} parent=1 // pred_region
      %132 = dma.done [#allocation12], 8192
    $region57: #{tpu_custom_call.1} parent=1 // pred_fallthru
      _
    // Predicated region
    $region58: #{tpu_custom_call.1} parent=1 // pred_check
      _
    $region59: #{tpu_custom_call.1} parent=1 // pred_check_branch
      %134 = sbr.rel (0) target = $region61
    $region60: #{tpu_custom_call.1} parent=1 // pred_region
      %135 = dma.done [#allocation12], 8192
    $region61: #{tpu_custom_call.1} parent=1 // pred_fallthru
      _
    // Predicated region
    $region62: #{tpu_custom_call.1} parent=1 // pred_check
      _
    $region63: #{tpu_custom_call.1} parent=1 // pred_check_branch
      %137 = sbr.rel (0) target = $region65
    $region64: #{tpu_custom_call.1} parent=1 // pred_region
      %138 = dma.done [#allocation15], 1024
    $region65: #{tpu_custom_call.1} parent=1 // pred_fallthru
      _
    %v140 = vld [vmem:[#allocation2] sm:$0xf]
    %v141 = vld [vmem:[#allocation2 + $0x4] sm:$0xf]
    %v142 = vld [vmem:[#allocation5] sm:$0xff]
    %v143 = vld [vmem:[#allocation5 + $0x8] sm:$0xf]
    %v144 = vld [vmem:[#allocation5 + $0xc] sm:$0xff]
    %v145 = vld [vmem:[#allocation5 + $0x14] sm:$0xf]
    %v146 = vld [vmem:[#allocation5 + $0x18] sm:$0xff]
    %v147 = vld [vmem:[#allocation5 + $0x20] sm:$0xf]
    %v148 = vld [vmem:[#allocation5 + $0x24] sm:$0xff]
    %v149 = vld [vmem:[#allocation5 + $0x2c] sm:$0xf]
    %v150 = vld [vmem:[#allocation5 + $0x30] sm:$0xff]
    %v151 = vld [vmem:[#allocation5 + $0x38] sm:$0xf]
    %v152 = vld [vmem:[#allocation5 + $0x3c] sm:$0xff]
    %v153 = vld [vmem:[#allocation5 + $0x44] sm:$0xf]
    %v154 = vld [vmem:[#allocation5 + $0x48] sm:$0xff]
    %v155 = vld [vmem:[#allocation5 + $0x50] sm:$0xf]
    %v156 = vld [vmem:[#allocation5 + $0x54] sm:$0xff]
    %v157 = vld [vmem:[#allocation5 + $0x5c] sm:$0xf]
    %v158 = vld [vmem:[#allocation5 + $0x60] sm:$0xff]
    %v159 = vld [vmem:[#allocation5 + $0x68] sm:$0xf]
    %v160 = vld [vmem:[#allocation5 + $0x6c] sm:$0xff]
    %v161 = vld [vmem:[#allocation5 + $0x74] sm:$0xf]
    %v162 = vld [vmem:[#allocation5 + $0x78] sm:$0xff]
    %v163 = vld [vmem:[#allocation5 + $0x80] sm:$0xf]
    %v164 = vld [vmem:[#allocation5 + $0x84] sm:$0xff]
    %v165 = vld [vmem:[#allocation5 + $0x8c] sm:$0xf]
    %v166 = vld [vmem:[#allocation5 + $0x90] sm:$0xff]
    %v167 = vld [vmem:[#allocation5 + $0x98] sm:$0xf]
    %v168 = vld [vmem:[#allocation5 + $0x9c] sm:$0xff]
    %v169 = vld [vmem:[#allocation5 + $0xa4] sm:$0xf]
    %v170 = vld [vmem:[#allocation5 + $0xa8] sm:$0xff]
    %v171 = vld [vmem:[#allocation5 + $0xb0] sm:$0xf]
    %v172 = vld [vmem:[#allocation5 + $0xb4] sm:$0xff]
    %v173 = vld [vmem:[#allocation5 + $0xbc] sm:$0xf]
    %v176 = vunpack.c.l.b16 %v140
    %v177 = vunpack.c.l.b16 %v141
    %v178 = vpack.c.b16 %v177, %v176
    %v212 = vunpack.c.l.b16 %v142
    %v213 = vunpack.c.h.b16 %v142
    %v214 = vunpack.c.l.b16 %v143
    %v215 = vunpack.c.l.b16 %v144
    %v216 = vunpack.c.h.b16 %v144
    %v217 = vunpack.c.l.b16 %v145
    %v218 = vunpack.c.l.b16 %v146
    %v219 = vunpack.c.h.b16 %v146
    %v220 = vunpack.c.l.b16 %v147
    %v221 = vunpack.c.l.b16 %v148
    %v222 = vunpack.c.h.b16 %v148
    %v223 = vunpack.c.l.b16 %v149
    %v224 = vunpack.c.l.b16 %v150
    %v225 = vunpack.c.h.b16 %v150
    %v226 = vunpack.c.l.b16 %v151
    %v227 = vunpack.c.l.b16 %v152
    %v228 = vunpack.c.h.b16 %v152
    %v229 = vunpack.c.l.b16 %v153
    %v230 = vunpack.c.l.b16 %v154
    %v231 = vunpack.c.h.b16 %v154
    %v232 = vunpack.c.l.b16 %v155
    %v233 = vunpack.c.l.b16 %v156
    %v234 = vunpack.c.h.b16 %v156
    %v235 = vunpack.c.l.b16 %v157
    %v236 = vunpack.c.l.b16 %v158
    %v237 = vunpack.c.h.b16 %v158
    %v238 = vunpack.c.l.b16 %v159
    %v239 = vunpack.c.l.b16 %v160
    %v240 = vunpack.c.h.b16 %v160
    %v241 = vunpack.c.l.b16 %v161
    %v242 = vunpack.c.l.b16 %v162
    %v243 = vunpack.c.h.b16 %v162
    %v244 = vunpack.c.l.b16 %v163
    %v245 = vunpack.c.l.b16 %v164
    %v246 = vunpack.c.h.b16 %v164
    %v247 = vunpack.c.l.b16 %v165
    %v248 = vunpack.c.l.b16 %v166
    %v249 = vunpack.c.h.b16 %v166
    %v250 = vunpack.c.l.b16 %v167
    %v251 = vunpack.c.l.b16 %v168
    %v252 = vunpack.c.h.b16 %v168
    %v253 = vunpack.c.l.b16 %v169
    %v254 = vunpack.c.l.b16 %v170
    %v255 = vunpack.c.h.b16 %v170
    %v256 = vunpack.c.l.b16 %v171
    %v257 = vunpack.c.l.b16 %v172
    %v258 = vunpack.c.h.b16 %v172
    %v259 = vunpack.c.l.b16 %v173
    %v260 = vpack.c.b16 %v215, %v212
    %v261 = vpack.c.b16 %v216, %v213
    %v262 = vpack.c.b16 %v217, %v214
    %v263 = vpack.c.b16 %v221, %v218
    %v264 = vpack.c.b16 %v222, %v219
    %v265 = vpack.c.b16 %v223, %v220
    %v266 = vpack.c.b16 %v227, %v224
    %v267 = vpack.c.b16 %v228, %v225
    %v268 = vpack.c.b16 %v229, %v226
    %v269 = vpack.c.b16 %v233, %v230
    %v270 = vpack.c.b16 %v234, %v231
    %v271 = vpack.c.b16 %v235, %v232
    %v272 = vpack.c.b16 %v239, %v236
    %v273 = vpack.c.b16 %v240, %v237
    %v274 = vpack.c.b16 %v241, %v238
    %v275 = vpack.c.b16 %v245, %v242
    %v276 = vpack.c.b16 %v246, %v243
    %v277 = vpack.c.b16 %v247, %v244
    %v278 = vpack.c.b16 %v251, %v248
    %v279 = vpack.c.b16 %v252, %v249
    %v280 = vpack.c.b16 %v253, %v250
    %v281 = vpack.c.b16 %v257, %v254
    %v282 = vpack.c.b16 %v258, %v255
    %v283 = vpack.c.b16 %v259, %v256
    %308 = vmatprep.subr.bf16.mxu0 %v261
    %309 = vmatpush1.bf16.msra.mxu0 %v260
    %310 = vmatprep.subr.bf16.mxu0 %v264
    %311 = vmatpush1.bf16.msra.mxu0 %v263
    %312 = vmatprep.subr.bf16.mxu0 %v267
    %313 = vmatpush1.bf16.msra.mxu0 %v266
    %314 = vmatprep.subr.bf16.mxu0 %v270
    %315 = vmatpush1.bf16.msra.mxu0 %v269
    %316 = vmatprep.subr.bf16.mxu0 %v273
    %317 = vmatpush1.bf16.msra.mxu0 %v272
    %318 = vmatprep.subr.bf16.mxu0 %v276
    %319 = vmatpush1.bf16.msra.mxu0 %v275
    %320 = vmatprep.subr.bf16.mxu0 %v279
    %321 = vmatpush1.bf16.msra.mxu0 %v278
    %322 = vmatprep.subr.bf16.mxu0 %v282
    %323 = vmatpush1.bf16.msra.mxu0 %v281
    %324 = vmatprep.subr.bf16.mxu0 0
    %325 = vmatpush1.bf16.msra.mxu0 0
    %326 = vmatprep.subr.bf16.mxu0 0
    %327 = vmatpush1.bf16.msra.mxu0 0
    %328 = vmatprep.subr.bf16.mxu0 0
    %329 = vmatpush1.bf16.msra.mxu0 0
    %330 = vmatprep.subr.bf16.mxu0 0
    %331 = vmatpush1.bf16.msra.mxu0 0
    %332 = vmatprep.subr.bf16.mxu0 0
    %333 = vmatpush1.bf16.msra.mxu0 0
    %334 = vmatprep.subr.bf16.mxu0 0
    %335 = vmatpush1.bf16.msra.mxu0 0
    %336 = vmatprep.subr.bf16.mxu0 0
    %337 = vmatpush1.bf16.msra.mxu0 0
    %338 = vmatprep.subr.bf16.mxu0 0
    %339 = vmatpush1.bf16.msra.mxu0 0
    %340 = vmatprep.mubr.bf16.mxu0 0
    %341 = vmatmul.mubr.bf16.gmra.mrb[0].mxu0 %v178
    %v342 = vpop.f32.mrb[0].mxu0
    %v343 = vadd.f32 0.0, %v342
    %v344 = vpop.f32.mrb[0].mxu0
    %v345 = vadd.f32 0.0, %v344
    %v346 = vpop.f32.mrb[0].mxu0
    %v347 = vadd.f32 0.0, %v346
    %v348 = vpop.f32.mrb[0].mxu0
    %v349 = vadd.f32 0.0, %v348
    %350 = vdwg.mxu0
    %351 = vmatprep.subr.bf16.mxu0 0
    %352 = vmatpush1.bf16.msra.mxu0 %v262
    %353 = vmatprep.subr.bf16.mxu0 0
    %354 = vmatpush1.bf16.msra.mxu0 %v265
    %355 = vmatprep.subr.bf16.mxu0 0
    %356 = vmatpush1.bf16.msra.mxu0 %v268
    %357 = vmatprep.subr.bf16.mxu0 0
    %358 = vmatpush1.bf16.msra.mxu0 %v271
    %359 = vmatprep.subr.bf16.mxu0 0
    %360 = vmatpush1.bf16.msra.mxu0 %v274
    %361 = vmatprep.subr.bf16.mxu0 0
    %362 = vmatpush1.bf16.msra.mxu0 %v277
    %363 = vmatprep.subr.bf16.mxu0 0
    %364 = vmatpush1.bf16.msra.mxu0 %v280
    %365 = vmatprep.subr.bf16.mxu0 0
    %366 = vmatpush1.bf16.msra.mxu0 %v283
    %367 = vmatprep.subr.bf16.mxu0 0
    %368 = vmatpush1.bf16.msra.mxu0 0
    %369 = vmatprep.subr.bf16.mxu0 0
    %370 = vmatpush1.bf16.msra.mxu0 0
    %371 = vmatprep.subr.bf16.mxu0 0
    %372 = vmatpush1.bf16.msra.mxu0 0
    %373 = vmatprep.subr.bf16.mxu0 0
    %374 = vmatpush1.bf16.msra.mxu0 0
    %375 = vmatprep.subr.bf16.mxu0 0
    %376 = vmatpush1.bf16.msra.mxu0 0
    %377 = vmatprep.subr.bf16.mxu0 0
    %378 = vmatpush1.bf16.msra.mxu0 0
    %379 = vmatprep.subr.bf16.mxu0 0
    %380 = vmatpush1.bf16.msra.mxu0 0
    %381 = vmatprep.subr.bf16.mxu0 0
    %382 = vmatpush1.bf16.msra.mxu0 0
    %383 = vmatprep.mubr.bf16.mxu0 0
    %384 = vmatmul.mubr.bf16.gmra.mrb[0].mxu0 %v178
    %v385 = vpop.f32.mrb[0].mxu0
    %v386 = vadd.f32 0.0, %v385
    %v387 = vpop.f32.mrb[0].mxu0
    %v388 = vpop.f32.mrb[0].mxu0
    %v389 = vadd.f32 0.0, %v388
    %v390 = vpop.f32.mrb[0].mxu0
    %391 = vdwg.mxu0
    %v392 = vpack.c.bf16 %v347, %v343
    %v393 = vpack.c.bf16 %v349, %v345
    %v394 = vpack.c.bf16 %v389, %v386
    %v395 = vld [vmem:[#allocation7] sm:$0xff]
    %v396 = vld [vmem:[#allocation7 + $0x8] sm:$0xff]
    %v397 = vld [vmem:[#allocation7 + $0x10] sm:$0xff]
    %v398 = vld [vmem:[#allocation7 + $0x18] sm:$0xff]
    %v399 = vld [vmem:[#allocation7 + $0x20] sm:$0xff]
    %v400 = vld [vmem:[#allocation7 + $0x28] sm:$0xff]
    %v401 = vld [vmem:[#allocation7 + $0x30] sm:$0xff]
    %v402 = vld [vmem:[#allocation7 + $0x38] sm:$0xff]
    %v403 = vld [vmem:[#allocation7 + $0x40] sm:$0xff]
    %v404 = vld [vmem:[#allocation7 + $0x48] sm:$0xff]
    %v405 = vld [vmem:[#allocation7 + $0x50] sm:$0xff]
    %v406 = vld [vmem:[#allocation7 + $0x58] sm:$0xff]
    %v407 = vld [vmem:[#allocation7 + $0x60] sm:$0xff]
    %v408 = vld [vmem:[#allocation7 + $0x68] sm:$0xff]
    %v409 = vld [vmem:[#allocation7 + $0x70] sm:$0xff]
    %v410 = vld [vmem:[#allocation7 + $0x78] sm:$0xff]
    %v411 = vld [vmem:[#allocation7 + $0x80] sm:$0xff]
    %v412 = vld [vmem:[#allocation7 + $0x88] sm:$0xff]
    %v413 = vld [vmem:[#allocation7 + $0x90] sm:$0xff]
    %v414 = vld [vmem:[#allocation7 + $0x98] sm:$0xff]
    %v415 = vld [vmem:[#allocation7 + $0xa0] sm:$0xff]
    %v416 = vld [vmem:[#allocation7 + $0xa8] sm:$0xff]
    %v417 = vld [vmem:[#allocation7 + $0xb0] sm:$0xff]
    %v418 = vld [vmem:[#allocation7 + $0xb8] sm:$0xff]
    %v419 = vld [vmem:[#allocation7 + $0xc0] sm:$0xff]
    %v420 = vld [vmem:[#allocation7 + $0xc8] sm:$0xff]
    %v421 = vld [vmem:[#allocation7 + $0xd0] sm:$0xff]
    %v422 = vld [vmem:[#allocation7 + $0xd8] sm:$0xff]
    %v423 = vld [vmem:[#allocation7 + $0xe0] sm:$0xff]
    %v424 = vld [vmem:[#allocation7 + $0xe8] sm:$0xff]
    %v425 = vld [vmem:[#allocation7 + $0xf0] sm:$0xff]
    %v426 = vld [vmem:[#allocation7 + $0xf8] sm:$0xff]
    %v427 = vld [vmem:[#allocation7 + $0x100] sm:$0xff]
    %v428 = vld [vmem:[#allocation7 + $0x108] sm:$0xff]
    %v429 = vld [vmem:[#allocation7 + $0x110] sm:$0xff]
    %v430 = vld [vmem:[#allocation7 + $0x118] sm:$0xff]
    %v431 = vld [vmem:[#allocation7 + $0x120] sm:$0xff]
    %v432 = vld [vmem:[#allocation7 + $0x128] sm:$0xff]
    %v433 = vld [vmem:[#allocation7 + $0x130] sm:$0xff]
    %v434 = vld [vmem:[#allocation7 + $0x138] sm:$0xff]
    %v435 = vld [vmem:[#allocation7 + $0x140] sm:$0xff]
    %v436 = vld [vmem:[#allocation7 + $0x148] sm:$0xff]
    %v437 = vld [vmem:[#allocation7 + $0x150] sm:$0xff]
    %v438 = vld [vmem:[#allocation7 + $0x158] sm:$0xff]
    %v439 = vld [vmem:[#allocation7 + $0x160] sm:$0xff]
    %v440 = vld [vmem:[#allocation7 + $0x168] sm:$0xff]
    %v441 = vld [vmem:[#allocation7 + $0x170] sm:$0xff]
    %v442 = vld [vmem:[#allocation7 + $0x178] sm:$0xff]
    %v443 = vld [vmem:[#allocation7 + $0x180] sm:$0xff]
    %v444 = vld [vmem:[#allocation7 + $0x188] sm:$0xff]
    %v445 = vld [vmem:[#allocation7 + $0x190] sm:$0xff]
    %v446 = vld [vmem:[#allocation7 + $0x198] sm:$0xff]
    %v447 = vld [vmem:[#allocation7 + $0x1a0] sm:$0xff]
    %v448 = vld [vmem:[#allocation7 + $0x1a8] sm:$0xff]
    %v449 = vld [vmem:[#allocation7 + $0x1b0] sm:$0xff]
    %v450 = vld [vmem:[#allocation7 + $0x1b8] sm:$0xff]
    %v451 = vld [vmem:[#allocation7 + $0x1c0] sm:$0xff]
    %v452 = vld [vmem:[#allocation7 + $0x1c8] sm:$0xff]
    %v453 = vld [vmem:[#allocation7 + $0x1d0] sm:$0xff]
    %v454 = vld [vmem:[#allocation7 + $0x1d8] sm:$0xff]
    %v455 = vld [vmem:[#allocation7 + $0x1e0] sm:$0xff]
    %v456 = vld [vmem:[#allocation7 + $0x1e8] sm:$0xff]
    %v457 = vld [vmem:[#allocation7 + $0x1f0] sm:$0xff]
    %v458 = vld [vmem:[#allocation7 + $0x1f8] sm:$0xff]
    %v523 = vunpack.c.l.b16 %v395
    %v524 = vunpack.c.h.b16 %v395
    %v525 = vunpack.c.l.b16 %v396
    %v526 = vunpack.c.h.b16 %v396
    %v527 = vunpack.c.l.b16 %v397
    %v528 = vunpack.c.h.b16 %v397
    %v529 = vunpack.c.l.b16 %v398
    %v530 = vunpack.c.h.b16 %v398
    %v531 = vunpack.c.l.b16 %v399
    %v532 = vunpack.c.h.b16 %v399
    %v533 = vunpack.c.l.b16 %v400
    %v534 = vunpack.c.h.b16 %v400
    %v535 = vunpack.c.l.b16 %v401
    %v536 = vunpack.c.h.b16 %v401
    %v537 = vunpack.c.l.b16 %v402
    %v538 = vunpack.c.h.b16 %v402
    %v539 = vunpack.c.l.b16 %v403
    %v540 = vunpack.c.h.b16 %v403
    %v541 = vunpack.c.l.b16 %v404
    %v542 = vunpack.c.h.b16 %v404
    %v543 = vunpack.c.l.b16 %v405
    %v544 = vunpack.c.h.b16 %v405
    %v545 = vunpack.c.l.b16 %v406
    %v546 = vunpack.c.h.b16 %v406
    %v547 = vunpack.c.l.b16 %v407
    %v548 = vunpack.c.h.b16 %v407
    %v549 = vunpack.c.l.b16 %v408
    %v550 = vunpack.c.h.b16 %v408
    %v551 = vunpack.c.l.b16 %v409
    %v552 = vunpack.c.h.b16 %v409
    %v553 = vunpack.c.l.b16 %v410
    %v554 = vunpack.c.h.b16 %v410
    %v555 = vunpack.c.l.b16 %v411
    %v556 = vunpack.c.h.b16 %v411
    %v557 = vunpack.c.l.b16 %v412
    %v558 = vunpack.c.h.b16 %v412
    %v559 = vunpack.c.l.b16 %v413
    %v560 = vunpack.c.h.b16 %v413
    %v561 = vunpack.c.l.b16 %v414
    %v562 = vunpack.c.h.b16 %v414
    %v563 = vunpack.c.l.b16 %v415
    %v564 = vunpack.c.h.b16 %v415
    %v565 = vunpack.c.l.b16 %v416
    %v566 = vunpack.c.h.b16 %v416
    %v567 = vunpack.c.l.b16 %v417
    %v568 = vunpack.c.h.b16 %v417
    %v569 = vunpack.c.l.b16 %v418
    %v570 = vunpack.c.h.b16 %v418
    %v571 = vunpack.c.l.b16 %v419
    %v572 = vunpack.c.h.b16 %v419
    %v573 = vunpack.c.l.b16 %v420
    %v574 = vunpack.c.h.b16 %v420
    %v575 = vunpack.c.l.b16 %v421
    %v576 = vunpack.c.h.b16 %v421
    %v577 = vunpack.c.l.b16 %v422
    %v578 = vunpack.c.h.b16 %v422
    %v579 = vunpack.c.l.b16 %v423
    %v580 = vunpack.c.h.b16 %v423
    %v581 = vunpack.c.l.b16 %v424
    %v582 = vunpack.c.h.b16 %v424
    %v583 = vunpack.c.l.b16 %v425
    %v584 = vunpack.c.h.b16 %v425
    %v585 = vunpack.c.l.b16 %v426
    %v586 = vunpack.c.h.b16 %v426
    %v587 = vunpack.c.l.b16 %v427
    %v588 = vunpack.c.h.b16 %v427
    %v589 = vunpack.c.l.b16 %v428
    %v590 = vunpack.c.h.b16 %v428
    %v591 = vunpack.c.l.b16 %v429
    %v592 = vunpack.c.h.b16 %v429
    %v593 = vunpack.c.l.b16 %v430
    %v594 = vunpack.c.h.b16 %v430
    %v595 = vunpack.c.l.b16 %v431
    %v596 = vunpack.c.h.b16 %v431
    %v597 = vunpack.c.l.b16 %v432
    %v598 = vunpack.c.h.b16 %v432
    %v599 = vunpack.c.l.b16 %v433
    %v600 = vunpack.c.h.b16 %v433
    %v601 = vunpack.c.l.b16 %v434
    %v602 = vunpack.c.h.b16 %v434
    %v603 = vunpack.c.l.b16 %v435
    %v604 = vunpack.c.h.b16 %v435
    %v605 = vunpack.c.l.b16 %v436
    %v606 = vunpack.c.h.b16 %v436
    %v607 = vunpack.c.l.b16 %v437
    %v608 = vunpack.c.h.b16 %v437
    %v609 = vunpack.c.l.b16 %v438
    %v610 = vunpack.c.h.b16 %v438
    %v611 = vunpack.c.l.b16 %v439
    %v612 = vunpack.c.h.b16 %v439
    %v613 = vunpack.c.l.b16 %v440
    %v614 = vunpack.c.h.b16 %v440
    %v615 = vunpack.c.l.b16 %v441
    %v616 = vunpack.c.h.b16 %v441
    %v617 = vunpack.c.l.b16 %v442
    %v618 = vunpack.c.h.b16 %v442
    %v619 = vunpack.c.l.b16 %v443
    %v620 = vunpack.c.h.b16 %v443
    %v621 = vunpack.c.l.b16 %v444
    %v622 = vunpack.c.h.b16 %v444
    %v623 = vunpack.c.l.b16 %v445
    %v624 = vunpack.c.h.b16 %v445
    %v625 = vunpack.c.l.b16 %v446
    %v626 = vunpack.c.h.b16 %v446
    %v627 = vunpack.c.l.b16 %v447
    %v628 = vunpack.c.h.b16 %v447
    %v629 = vunpack.c.l.b16 %v448
    %v630 = vunpack.c.h.b16 %v448
    %v631 = vunpack.c.l.b16 %v449
    %v632 = vunpack.c.h.b16 %v449
    %v633 = vunpack.c.l.b16 %v450
    %v634 = vunpack.c.h.b16 %v450
    %v635 = vunpack.c.l.b16 %v451
    %v636 = vunpack.c.h.b16 %v451
    %v637 = vunpack.c.l.b16 %v452
    %v638 = vunpack.c.h.b16 %v452
    %v639 = vunpack.c.l.b16 %v453
    %v640 = vunpack.c.h.b16 %v453
    %v641 = vunpack.c.l.b16 %v454
    %v642 = vunpack.c.h.b16 %v454
    %v643 = vunpack.c.l.b16 %v455
    %v644 = vunpack.c.h.b16 %v455
    %v645 = vunpack.c.l.b16 %v456
    %v646 = vunpack.c.h.b16 %v456
    %v647 = vunpack.c.l.b16 %v457
    %v648 = vunpack.c.h.b16 %v457
    %v649 = vunpack.c.l.b16 %v458
    %v650 = vunpack.c.h.b16 %v458
    %v651 = vpack.c.b16 %v531, %v523
    %v652 = vpack.c.b16 %v532, %v524
    %v653 = vpack.c.b16 %v533, %v525
    %v654 = vpack.c.b16 %v534, %v526
    %v655 = vpack.c.b16 %v535, %v527
    %v656 = vpack.c.b16 %v536, %v528
    %v657 = vpack.c.b16 %v537, %v529
    %v658 = vpack.c.b16 %v538, %v530
    %v659 = vpack.c.b16 %v547, %v539
    %v660 = vpack.c.b16 %v548, %v540
    %v661 = vpack.c.b16 %v549, %v541
    %v662 = vpack.c.b16 %v550, %v542
    %v663 = vpack.c.b16 %v551, %v543
    %v664 = vpack.c.b16 %v552, %v544
    %v665 = vpack.c.b16 %v553, %v545
    %v666 = vpack.c.b16 %v554, %v546
    %v667 = vpack.c.b16 %v563, %v555
    %v668 = vpack.c.b16 %v564, %v556
    %v669 = vpack.c.b16 %v565, %v557
    %v670 = vpack.c.b16 %v566, %v558
    %v671 = vpack.c.b16 %v567, %v559
    %v672 = vpack.c.b16 %v568, %v560
    %v673 = vpack.c.b16 %v569, %v561
    %v674 = vpack.c.b16 %v570, %v562
    %v675 = vpack.c.b16 %v579, %v571
    %v676 = vpack.c.b16 %v580, %v572
    %v677 = vpack.c.b16 %v581, %v573
    %v678 = vpack.c.b16 %v582, %v574
    %v679 = vpack.c.b16 %v583, %v575
    %v680 = vpack.c.b16 %v584, %v576
    %v681 = vpack.c.b16 %v585, %v577
    %v682 = vpack.c.b16 %v586, %v578
    %v683 = vpack.c.b16 %v595, %v587
    %v684 = vpack.c.b16 %v596, %v588
    %v685 = vpack.c.b16 %v597, %v589
    %v686 = vpack.c.b16 %v598, %v590
    %v687 = vpack.c.b16 %v599, %v591
    %v688 = vpack.c.b16 %v600, %v592
    %v689 = vpack.c.b16 %v601, %v593
    %v690 = vpack.c.b16 %v602, %v594
    %v691 = vpack.c.b16 %v611, %v603
    %v692 = vpack.c.b16 %v612, %v604
    %v693 = vpack.c.b16 %v613, %v605
    %v694 = vpack.c.b16 %v614, %v606
    %v695 = vpack.c.b16 %v615, %v607
    %v696 = vpack.c.b16 %v616, %v608
    %v697 = vpack.c.b16 %v617, %v609
    %v698 = vpack.c.b16 %v618, %v610
    %v699 = vpack.c.b16 %v627, %v619
    %v700 = vpack.c.b16 %v628, %v620
    %v701 = vpack.c.b16 %v629, %v621
    %v702 = vpack.c.b16 %v630, %v622
    %v703 = vpack.c.b16 %v631, %v623
    %v704 = vpack.c.b16 %v632, %v624
    %v705 = vpack.c.b16 %v633, %v625
    %v706 = vpack.c.b16 %v634, %v626
    %v707 = vpack.c.b16 %v643, %v635
    %v708 = vpack.c.b16 %v644, %v636
    %v709 = vpack.c.b16 %v645, %v637
    %v710 = vpack.c.b16 %v646, %v638
    %v711 = vpack.c.b16 %v647, %v639
    %v712 = vpack.c.b16 %v648, %v640
    %v713 = vpack.c.b16 %v649, %v641
    %v714 = vpack.c.b16 %v650, %v642
    %779 = vmatprep.subr.bf16.mxu0 %v652
    %780 = vmatpush1.bf16.msra.mxu0 %v651
    %781 = vmatprep.subr.bf16.mxu0 %v660
    %782 = vmatpush1.bf16.msra.mxu0 %v659
    %783 = vmatprep.subr.bf16.mxu0 %v668
    %784 = vmatpush1.bf16.msra.mxu0 %v667
    %785 = vmatprep.subr.bf16.mxu0 %v676
    %786 = vmatpush1.bf16.msra.mxu0 %v675
    %787 = vmatprep.subr.bf16.mxu0 %v684
    %788 = vmatpush1.bf16.msra.mxu0 %v683
    %789 = vmatprep.subr.bf16.mxu0 %v692
    %790 = vmatpush1.bf16.msra.mxu0 %v691
    %791 = vmatprep.subr.bf16.mxu0 %v700
    %792 = vmatpush1.bf16.msra.mxu0 %v699
    %793 = vmatprep.subr.bf16.mxu0 %v708
    %794 = vmatpush1.bf16.msra.mxu0 %v707
    %795 = vmatprep.subr.bf16.mxu0 0
    %796 = vmatpush1.bf16.msra.mxu0 0
    %797 = vmatprep.subr.bf16.mxu0 0
    %798 = vmatpush1.bf16.msra.mxu0 0
    %799 = vmatprep.subr.bf16.mxu0 0
    %800 = vmatpush1.bf16.msra.mxu0 0
    %801 = vmatprep.subr.bf16.mxu0 0
    %802 = vmatpush1.bf16.msra.mxu0 0
    %803 = vmatprep.subr.bf16.mxu0 0
    %804 = vmatpush1.bf16.msra.mxu0 0
    %805 = vmatprep.subr.bf16.mxu0 0
    %806 = vmatpush1.bf16.msra.mxu0 0
    %807 = vmatprep.subr.bf16.mxu0 0
    %808 = vmatpush1.bf16.msra.mxu0 0
    %809 = vmatprep.subr.bf16.mxu0 0
    %810 = vmatpush1.bf16.msra.mxu0 0
    %811 = vmatprep.mubr.bf16.mxu0 0
    %812 = vmatmul.mubr.bf16.gmra.mrb[0].mxu0 %v393
    %v813 = vpop.f32.mrb[0].mxu0
    %v814 = vadd.f32 0.0, %v813
    %v815 = vpop.f32.mrb[0].mxu0
    %v816 = vadd.f32 0.0, %v815
    %v817 = vpop.f32.mrb[0].mxu0
    %v818 = vadd.f32 0.0, %v817
    %v819 = vpop.f32.mrb[0].mxu0
    %v820 = vadd.f32 0.0, %v819
    %821 = vdwg.mxu0
    %822 = vmatprep.subr.bf16.mxu0 %v654
    %823 = vmatpush1.bf16.msra.mxu0 %v653
    %824 = vmatprep.subr.bf16.mxu0 %v662
    %825 = vmatpush1.bf16.msra.mxu0 %v661
    %826 = vmatprep.subr.bf16.mxu0 %v670
    %827 = vmatpush1.bf16.msra.mxu0 %v669
    %828 = vmatprep.subr.bf16.mxu0 %v678
    %829 = vmatpush1.bf16.msra.mxu0 %v677
    %830 = vmatprep.subr.bf16.mxu0 %v686
    %831 = vmatpush1.bf16.msra.mxu0 %v685
    %832 = vmatprep.subr.bf16.mxu0 %v694
    %833 = vmatpush1.bf16.msra.mxu0 %v693
    %834 = vmatprep.subr.bf16.mxu0 %v702
    %835 = vmatpush1.bf16.msra.mxu0 %v701
    %836 = vmatprep.subr.bf16.mxu0 %v710
    %837 = vmatpush1.bf16.msra.mxu0 %v709
    %838 = vmatprep.subr.bf16.mxu0 0
    %839 = vmatpush1.bf16.msra.mxu0 0
    %840 = vmatprep.subr.bf16.mxu0 0
    %841 = vmatpush1.bf16.msra.mxu0 0
    %842 = vmatprep.subr.bf16.mxu0 0
    %843 = vmatpush1.bf16.msra.mxu0 0
    %844 = vmatprep.subr.bf16.mxu0 0
    %845 = vmatpush1.bf16.msra.mxu0 0
    %846 = vmatprep.subr.bf16.mxu0 0
    %847 = vmatpush1.bf16.msra.mxu0 0
    %848 = vmatprep.subr.bf16.mxu0 0
    %849 = vmatpush1.bf16.msra.mxu0 0
    %850 = vmatprep.subr.bf16.mxu0 0
    %851 = vmatpush1.bf16.msra.mxu0 0
    %852 = vmatprep.subr.bf16.mxu0 0
    %853 = vmatpush1.bf16.msra.mxu0 0
    %854 = vmatprep.mubr.bf16.mxu0 0
    %855 = vmatmul.mubr.bf16.gmra.mrb[0].mxu0 %v393
    %v856 = vpop.f32.mrb[0].mxu0
    %v857 = vadd.f32 0.0, %v856
    %v858 = vpop.f32.mrb[0].mxu0
    %v859 = vadd.f32 0.0, %v858
    %v860 = vpop.f32.mrb[0].mxu0
    %v861 = vadd.f32 0.0, %v860
    %v862 = vpop.f32.mrb[0].mxu0
    %v863 = vadd.f32 0.0, %v862
    %864 = vdwg.mxu0
    %865 = vmatprep.subr.bf16.mxu0 %v656
    %866 = vmatpush1.bf16.msra.mxu0 %v655
    %867 = vmatprep.subr.bf16.mxu0 %v664
    %868 = vmatpush1.bf16.msra.mxu0 %v663
    %869 = vmatprep.subr.bf16.mxu0 %v672
    %870 = vmatpush1.bf16.msra.mxu0 %v671
    %871 = vmatprep.subr.bf16.mxu0 %v680
    %872 = vmatpush1.bf16.msra.mxu0 %v679
    %873 = vmatprep.subr.bf16.mxu0 %v688
    %874 = vmatpush1.bf16.msra.mxu0 %v687
    %875 = vmatprep.subr.bf16.mxu0 %v696
    %876 = vmatpush1.bf16.msra.mxu0 %v695
    %877 = vmatprep.subr.bf16.mxu0 %v704
    %878 = vmatpush1.bf16.msra.mxu0 %v703
    %879 = vmatprep.subr.bf16.mxu0 %v712
    %880 = vmatpush1.bf16.msra.mxu0 %v711
    %881 = vmatprep.subr.bf16.mxu0 0
    %882 = vmatpush1.bf16.msra.mxu0 0
    %883 = vmatprep.subr.bf16.mxu0 0
    %884 = vmatpush1.bf16.msra.mxu0 0
    %885 = vmatprep.subr.bf16.mxu0 0
    %886 = vmatpush1.bf16.msra.mxu0 0
    %887 = vmatprep.subr.bf16.mxu0 0
    %888 = vmatpush1.bf16.msra.mxu0 0
    %889 = vmatprep.subr.bf16.mxu0 0
    %890 = vmatpush1.bf16.msra.mxu0 0
    %891 = vmatprep.subr.bf16.mxu0 0
    %892 = vmatpush1.bf16.msra.mxu0 0
    %893 = vmatprep.subr.bf16.mxu0 0
    %894 = vmatpush1.bf16.msra.mxu0 0
    %895 = vmatprep.subr.bf16.mxu0 0
    %896 = vmatpush1.bf16.msra.mxu0 0
    %897 = vmatprep.mubr.bf16.mxu0 0
    %898 = vmatmul.mubr.bf16.gmra.mrb[0].mxu0 %v393
    %v899 = vpop.f32.mrb[0].mxu0
    %v900 = vadd.f32 0.0, %v899
    %v901 = vpop.f32.mrb[0].mxu0
    %v902 = vadd.f32 0.0, %v901
    %v903 = vpop.f32.mrb[0].mxu0
    %v904 = vadd.f32 0.0, %v903
    %v905 = vpop.f32.mrb[0].mxu0
    %v906 = vadd.f32 0.0, %v905
    %907 = vdwg.mxu0
    %908 = vmatprep.subr.bf16.mxu0 %v658
    %909 = vmatpush1.bf16.msra.mxu0 %v657
    %910 = vmatprep.subr.bf16.mxu0 %v666
    %911 = vmatpush1.bf16.msra.mxu0 %v665
    %912 = vmatprep.subr.bf16.mxu0 %v674
    %913 = vmatpush1.bf16.msra.mxu0 %v673
    %914 = vmatprep.subr.bf16.mxu0 %v682
    %915 = vmatpush1.bf16.msra.mxu0 %v681
    %916 = vmatprep.subr.bf16.mxu0 %v690
    %917 = vmatpush1.bf16.msra.mxu0 %v689
    %918 = vmatprep.subr.bf16.mxu0 %v698
    %919 = vmatpush1.bf16.msra.mxu0 %v697
    %920 = vmatprep.subr.bf16.mxu0 %v706
    %921 = vmatpush1.bf16.msra.mxu0 %v705
    %922 = vmatprep.subr.bf16.mxu0 %v714
    %923 = vmatpush1.bf16.msra.mxu0 %v713
    %924 = vmatprep.subr.bf16.mxu0 0
    %925 = vmatpush1.bf16.msra.mxu0 0
    %926 = vmatprep.subr.bf16.mxu0 0
    %927 = vmatpush1.bf16.msra.mxu0 0
    %928 = vmatprep.subr.bf16.mxu0 0
    %929 = vmatpush1.bf16.msra.mxu0 0
    %930 = vmatprep.subr.bf16.mxu0 0
    %931 = vmatpush1.bf16.msra.mxu0 0
    %932 = vmatprep.subr.bf16.mxu0 0
    %933 = vmatpush1.bf16.msra.mxu0 0
    %934 = vmatprep.subr.bf16.mxu0 0
    %935 = vmatpush1.bf16.msra.mxu0 0
    %936 = vmatprep.subr.bf16.mxu0 0
    %937 = vmatpush1.bf16.msra.mxu0 0
    %938 = vmatprep.subr.bf16.mxu0 0
    %939 = vmatpush1.bf16.msra.mxu0 0
    %940 = vmatprep.mubr.bf16.mxu0 0
    %941 = vmatmul.mubr.bf16.gmra.mrb[0].mxu0 %v393
    %v942 = vpop.f32.mrb[0].mxu0
    %v943 = vadd.f32 0.0, %v942
    %v944 = vpop.f32.mrb[0].mxu0
    %v945 = vadd.f32 0.0, %v944
    %v946 = vpop.f32.mrb[0].mxu0
    %v947 = vadd.f32 0.0, %v946
    %v948 = vpop.f32.mrb[0].mxu0
    %v949 = vadd.f32 0.0, %v948
    %950 = vdwg.mxu0
    %v951 = vpack.c.bf16 %v818, %v814
    %v952 = vpack.c.bf16 %v820, %v816
    %v953 = vpack.c.bf16 %v861, %v857
    %v954 = vpack.c.bf16 %v863, %v859
    %v955 = vpack.c.bf16 %v904, %v900
    %v956 = vpack.c.bf16 %v906, %v902
    %v957 = vpack.c.bf16 %v947, %v943
    %v958 = vpack.c.bf16 %v949, %v945
    %v959 = vmul.bf16 %v392, %v951
    %v960 = vmul.bf16 %v392, %v952
    %v961 = vmul.bf16 %v392, %v953
    %v962 = vmul.bf16 %v392, %v954
    %v963 = vmul.bf16 %v392, %v955
    %v964 = vmul.bf16 %v392, %v956
    %v965 = vmul.bf16 %v392, %v957
    %v966 = vmul.bf16 %v392, %v958
    %v967 = vld [vmem:[#allocation8] sm:$0xf]
    %v968 = vld [vmem:[#allocation8 + $0x4] sm:$0xf]
    %v969 = vld [vmem:[#allocation8 + $0x8] sm:$0xf]
    %v970 = vld [vmem:[#allocation8 + $0xc] sm:$0xf]
    %v971 = vld [vmem:[#allocation8 + $0x10] sm:$0xf]
    %v972 = vld [vmem:[#allocation8 + $0x14] sm:$0xf]
    %v973 = vld [vmem:[#allocation8 + $0x18] sm:$0xf]
    %v974 = vld [vmem:[#allocation8 + $0x1c] sm:$0xf]
    %v975 = vld [vmem:[#allocation8 + $0x20] sm:$0xf]
    %v976 = vld [vmem:[#allocation8 + $0x24] sm:$0xf]
    %v977 = vld [vmem:[#allocation8 + $0x28] sm:$0xf]
    %v978 = vld [vmem:[#allocation8 + $0x2c] sm:$0xf]
    %v979 = vld [vmem:[#allocation8 + $0x30] sm:$0xf]
    %v980 = vld [vmem:[#allocation8 + $0x34] sm:$0xf]
    %v981 = vld [vmem:[#allocation8 + $0x38] sm:$0xf]
    %v982 = vld [vmem:[#allocation8 + $0x3c] sm:$0xf]
    %v983 = vld [vmem:[#allocation8 + $0x40] sm:$0xf]
    %v984 = vld [vmem:[#allocation8 + $0x44] sm:$0xf]
    %v985 = vld [vmem:[#allocation8 + $0x48] sm:$0xf]
    %v986 = vld [vmem:[#allocation8 + $0x4c] sm:$0xf]
    %v987 = vld [vmem:[#allocation8 + $0x50] sm:$0xf]
    %v988 = vld [vmem:[#allocation8 + $0x54] sm:$0xf]
    %v989 = vld [vmem:[#allocation8 + $0x58] sm:$0xf]
    %v990 = vld [vmem:[#allocation8 + $0x5c] sm:$0xf]
    %v991 = vld [vmem:[#allocation8 + $0x60] sm:$0xf]
    %v992 = vld [vmem:[#allocation8 + $0x64] sm:$0xf]
    %v993 = vld [vmem:[#allocation8 + $0x68] sm:$0xf]
    %v994 = vld [vmem:[#allocation8 + $0x6c] sm:$0xf]
    %v995 = vld [vmem:[#allocation8 + $0x70] sm:$0xf]
    %v996 = vld [vmem:[#allocation8 + $0x74] sm:$0xf]
    %v997 = vld [vmem:[#allocation8 + $0x78] sm:$0xf]
    %v998 = vld [vmem:[#allocation8 + $0x7c] sm:$0xf]
    %v999 = vld [vmem:[#allocation8 + $0x80] sm:$0xf]
    %v1000 = vld [vmem:[#allocation8 + $0x84] sm:$0xf]
    %v1001 = vld [vmem:[#allocation8 + $0x88] sm:$0xf]
    %v1002 = vld [vmem:[#allocation8 + $0x8c] sm:$0xf]
    %v1003 = vld [vmem:[#allocation8 + $0x90] sm:$0xf]
    %v1004 = vld [vmem:[#allocation8 + $0x94] sm:$0xf]
    %v1005 = vld [vmem:[#allocation8 + $0x98] sm:$0xf]
    %v1006 = vld [vmem:[#allocation8 + $0x9c] sm:$0xf]
    %v1007 = vld [vmem:[#allocation8 + $0xa0] sm:$0xf]
    %v1008 = vld [vmem:[#allocation8 + $0xa4] sm:$0xf]
    %v1009 = vld [vmem:[#allocation8 + $0xa8] sm:$0xf]
    %v1010 = vld [vmem:[#allocation8 + $0xac] sm:$0xf]
    %v1011 = vld [vmem:[#allocation8 + $0xb0] sm:$0xf]
    %v1012 = vld [vmem:[#allocation8 + $0xb4] sm:$0xf]
    %v1013 = vld [vmem:[#allocation8 + $0xb8] sm:$0xf]
    %v1014 = vld [vmem:[#allocation8 + $0xbc] sm:$0xf]
    %v1015 = vld [vmem:[#allocation8 + $0xc0] sm:$0xf]
    %v1016 = vld [vmem:[#allocation8 + $0xc4] sm:$0xf]
    %v1017 = vld [vmem:[#allocation8 + $0xc8] sm:$0xf]
    %v1018 = vld [vmem:[#allocation8 + $0xcc] sm:$0xf]
    %v1019 = vld [vmem:[#allocation8 + $0xd0] sm:$0xf]
    %v1020 = vld [vmem:[#allocation8 + $0xd4] sm:$0xf]
    %v1021 = vld [vmem:[#allocation8 + $0xd8] sm:$0xf]
    %v1022 = vld [vmem:[#allocation8 + $0xdc] sm:$0xf]
    %v1023 = vld [vmem:[#allocation8 + $0xe0] sm:$0xf]
    %v1024 = vld [vmem:[#allocation8 + $0xe4] sm:$0xf]
    %v1025 = vld [vmem:[#allocation8 + $0xe8] sm:$0xf]
    %v1026 = vld [vmem:[#allocation8 + $0xec] sm:$0xf]
    %v1027 = vld [vmem:[#allocation8 + $0xf0] sm:$0xf]
    %v1028 = vld [vmem:[#allocation8 + $0xf4] sm:$0xf]
    %v1029 = vld [vmem:[#allocation8 + $0xf8] sm:$0xf]
    %v1030 = vld [vmem:[#allocation8 + $0xfc] sm:$0xf]
    %v1031 = vld [vmem:[#allocation8 + $0x100] sm:$0xf]
    %v1032 = vld [vmem:[#allocation8 + $0x104] sm:$0xf]
    %v1033 = vld [vmem:[#allocation8 + $0x108] sm:$0xf]
    %v1034 = vld [vmem:[#allocation8 + $0x10c] sm:$0xf]
    %v1035 = vld [vmem:[#allocation8 + $0x110] sm:$0xf]
    %v1036 = vld [vmem:[#allocation8 + $0x114] sm:$0xf]
    %v1037 = vld [vmem:[#allocation8 + $0x118] sm:$0xf]
    %v1038 = vld [vmem:[#allocation8 + $0x11c] sm:$0xf]
    %v1039 = vld [vmem:[#allocation8 + $0x120] sm:$0xf]
    %v1040 = vld [vmem:[#allocation8 + $0x124] sm:$0xf]
    %v1041 = vld [vmem:[#allocation8 + $0x128] sm:$0xf]
    %v1042 = vld [vmem:[#allocation8 + $0x12c] sm:$0xf]
    %v1043 = vld [vmem:[#allocation8 + $0x130] sm:$0xf]
    %v1044 = vld [vmem:[#allocation8 + $0x134] sm:$0xf]
    %v1045 = vld [vmem:[#allocation8 + $0x138] sm:$0xf]
    %v1046 = vld [vmem:[#allocation8 + $0x13c] sm:$0xf]
    %v1047 = vld [vmem:[#allocation8 + $0x140] sm:$0xf]
    %v1048 = vld [vmem:[#allocation8 + $0x144] sm:$0xf]
    %v1049 = vld [vmem:[#allocation8 + $0x148] sm:$0xf]
    %v1050 = vld [vmem:[#allocation8 + $0x14c] sm:$0xf]
    %v1051 = vld [vmem:[#allocation8 + $0x150] sm:$0xf]
    %v1052 = vld [vmem:[#allocation8 + $0x154] sm:$0xf]
    %v1053 = vld [vmem:[#allocation8 + $0x158] sm:$0xf]
    %v1054 = vld [vmem:[#allocation8 + $0x15c] sm:$0xf]
    %v1055 = vld [vmem:[#allocation8 + $0x160] sm:$0xf]
    %v1056 = vld [vmem:[#allocation8 + $0x164] sm:$0xf]
    %v1057 = vld [vmem:[#allocation8 + $0x168] sm:$0xf]
    %v1058 = vld [vmem:[#allocation8 + $0x16c] sm:$0xf]
    %v1059 = vld [vmem:[#allocation8 + $0x170] sm:$0xf]
    %v1060 = vld [vmem:[#allocation8 + $0x174] sm:$0xf]
    %v1061 = vld [vmem:[#allocation8 + $0x178] sm:$0xf]
    %v1062 = vld [vmem:[#allocation8 + $0x17c] sm:$0xf]
    %v1063 = vld [vmem:[#allocation8 + $0x180] sm:$0xf]
    %v1064 = vld [vmem:[#allocation8 + $0x184] sm:$0xf]
    %v1065 = vld [vmem:[#allocation8 + $0x188] sm:$0xf]
    %v1066 = vld [vmem:[#allocation8 + $0x18c] sm:$0xf]
    %v1067 = vld [vmem:[#allocation8 + $0x190] sm:$0xf]
    %v1068 = vld [vmem:[#allocation8 + $0x194] sm:$0xf]
    %v1069 = vld [vmem:[#allocation8 + $0x198] sm:$0xf]
    %v1070 = vld [vmem:[#allocation8 + $0x19c] sm:$0xf]
    %v1071 = vld [vmem:[#allocation8 + $0x1a0] sm:$0xf]
    %v1072 = vld [vmem:[#allocation8 + $0x1a4] sm:$0xf]
    %v1073 = vld [vmem:[#allocation8 + $0x1a8] sm:$0xf]
    %v1074 = vld [vmem:[#allocation8 + $0x1ac] sm:$0xf]
    %v1075 = vld [vmem:[#allocation8 + $0x1b0] sm:$0xf]
    %v1076 = vld [vmem:[#allocation8 + $0x1b4] sm:$0xf]
    %v1077 = vld [vmem:[#allocation8 + $0x1b8] sm:$0xf]
    %v1078 = vld [vmem:[#allocation8 + $0x1bc] sm:$0xf]
    %v1079 = vld [vmem:[#allocation8 + $0x1c0] sm:$0xf]
    %v1080 = vld [vmem:[#allocation8 + $0x1c4] sm:$0xf]
    %v1081 = vld [vmem:[#allocation8 + $0x1c8] sm:$0xf]
    %v1082 = vld [vmem:[#allocation8 + $0x1cc] sm:$0xf]
    %v1083 = vld [vmem:[#allocation8 + $0x1d0] sm:$0xf]
    %v1084 = vld [vmem:[#allocation8 + $0x1d4] sm:$0xf]
    %v1085 = vld [vmem:[#allocation8 + $0x1d8] sm:$0xf]
    %v1086 = vld [vmem:[#allocation8 + $0x1dc] sm:$0xf]
    %v1087 = vld [vmem:[#allocation8 + $0x1e0] sm:$0xf]
    %v1088 = vld [vmem:[#allocation8 + $0x1e4] sm:$0xf]
    %v1089 = vld [vmem:[#allocation8 + $0x1e8] sm:$0xf]
    %v1090 = vld [vmem:[#allocation8 + $0x1ec] sm:$0xf]
    %v1091 = vld [vmem:[#allocation8 + $0x1f0] sm:$0xf]
    %v1092 = vld [vmem:[#allocation8 + $0x1f4] sm:$0xf]
    %v1093 = vld [vmem:[#allocation8 + $0x1f8] sm:$0xf]
    %v1094 = vld [vmem:[#allocation8 + $0x1fc] sm:$0xf]
    %v1223 = vunpack.c.l.b16 %v967
    %v1224 = vunpack.c.l.b16 %v968
    %v1225 = vunpack.c.l.b16 %v969
    %v1226 = vunpack.c.l.b16 %v970
    %v1227 = vunpack.c.l.b16 %v971
    %v1228 = vunpack.c.l.b16 %v972
    %v1229 = vunpack.c.l.b16 %v973
    %v1230 = vunpack.c.l.b16 %v974
    %v1231 = vunpack.c.l.b16 %v975
    %v1232 = vunpack.c.l.b16 %v976
    %v1233 = vunpack.c.l.b16 %v977
    %v1234 = vunpack.c.l.b16 %v978
    %v1235 = vunpack.c.l.b16 %v979
    %v1236 = vunpack.c.l.b16 %v980
    %v1237 = vunpack.c.l.b16 %v981
    %v1238 = vunpack.c.l.b16 %v982
    %v1239 = vunpack.c.l.b16 %v983
    %v1240 = vunpack.c.l.b16 %v984
    %v1241 = vunpack.c.l.b16 %v985
    %v1242 = vunpack.c.l.b16 %v986
    %v1243 = vunpack.c.l.b16 %v987
    %v1244 = vunpack.c.l.b16 %v988
    %v1245 = vunpack.c.l.b16 %v989
    %v1246 = vunpack.c.l.b16 %v990
    %v1247 = vunpack.c.l.b16 %v991
    %v1248 = vunpack.c.l.b16 %v992
    %v1249 = vunpack.c.l.b16 %v993
    %v1250 = vunpack.c.l.b16 %v994
    %v1251 = vunpack.c.l.b16 %v995
    %v1252 = vunpack.c.l.b16 %v996
    %v1253 = vunpack.c.l.b16 %v997
    %v1254 = vunpack.c.l.b16 %v998
    %v1255 = vunpack.c.l.b16 %v999
    %v1256 = vunpack.c.l.b16 %v1000
    %v1257 = vunpack.c.l.b16 %v1001
    %v1258 = vunpack.c.l.b16 %v1002
    %v1259 = vunpack.c.l.b16 %v1003
    %v1260 = vunpack.c.l.b16 %v1004
    %v1261 = vunpack.c.l.b16 %v1005
    %v1262 = vunpack.c.l.b16 %v1006
    %v1263 = vunpack.c.l.b16 %v1007
    %v1264 = vunpack.c.l.b16 %v1008
    %v1265 = vunpack.c.l.b16 %v1009
    %v1266 = vunpack.c.l.b16 %v1010
    %v1267 = vunpack.c.l.b16 %v1011
    %v1268 = vunpack.c.l.b16 %v1012
    %v1269 = vunpack.c.l.b16 %v1013
    %v1270 = vunpack.c.l.b16 %v1014
    %v1271 = vunpack.c.l.b16 %v1015
    %v1272 = vunpack.c.l.b16 %v1016
    %v1273 = vunpack.c.l.b16 %v1017
    %v1274 = vunpack.c.l.b16 %v1018
    %v1275 = vunpack.c.l.b16 %v1019
    %v1276 = vunpack.c.l.b16 %v1020
    %v1277 = vunpack.c.l.b16 %v1021
    %v1278 = vunpack.c.l.b16 %v1022
    %v1279 = vunpack.c.l.b16 %v1023
    %v1280 = vunpack.c.l.b16 %v1024
    %v1281 = vunpack.c.l.b16 %v1025
    %v1282 = vunpack.c.l.b16 %v1026
    %v1283 = vunpack.c.l.b16 %v1027
    %v1284 = vunpack.c.l.b16 %v1028
    %v1285 = vunpack.c.l.b16 %v1029
    %v1286 = vunpack.c.l.b16 %v1030
    %v1287 = vunpack.c.l.b16 %v1031
    %v1288 = vunpack.c.l.b16 %v1032
    %v1289 = vunpack.c.l.b16 %v1033
    %v1290 = vunpack.c.l.b16 %v1034
    %v1291 = vunpack.c.l.b16 %v1035
    %v1292 = vunpack.c.l.b16 %v1036
    %v1293 = vunpack.c.l.b16 %v1037
    %v1294 = vunpack.c.l.b16 %v1038
    %v1295 = vunpack.c.l.b16 %v1039
    %v1296 = vunpack.c.l.b16 %v1040
    %v1297 = vunpack.c.l.b16 %v1041
    %v1298 = vunpack.c.l.b16 %v1042
    %v1299 = vunpack.c.l.b16 %v1043
    %v1300 = vunpack.c.l.b16 %v1044
    %v1301 = vunpack.c.l.b16 %v1045
    %v1302 = vunpack.c.l.b16 %v1046
    %v1303 = vunpack.c.l.b16 %v1047
    %v1304 = vunpack.c.l.b16 %v1048
    %v1305 = vunpack.c.l.b16 %v1049
    %v1306 = vunpack.c.l.b16 %v1050
    %v1307 = vunpack.c.l.b16 %v1051
    %v1308 = vunpack.c.l.b16 %v1052
    %v1309 = vunpack.c.l.b16 %v1053
    %v1310 = vunpack.c.l.b16 %v1054
    %v1311 = vunpack.c.l.b16 %v1055
    %v1312 = vunpack.c.l.b16 %v1056
    %v1313 = vunpack.c.l.b16 %v1057
    %v1314 = vunpack.c.l.b16 %v1058
    %v1315 = vunpack.c.l.b16 %v1059
    %v1316 = vunpack.c.l.b16 %v1060
    %v1317 = vunpack.c.l.b16 %v1061
    %v1318 = vunpack.c.l.b16 %v1062
    %v1319 = vunpack.c.l.b16 %v1063
    %v1320 = vunpack.c.l.b16 %v1064
    %v1321 = vunpack.c.l.b16 %v1065
    %v1322 = vunpack.c.l.b16 %v1066
    %v1323 = vunpack.c.l.b16 %v1067
    %v1324 = vunpack.c.l.b16 %v1068
    %v1325 = vunpack.c.l.b16 %v1069
    %v1326 = vunpack.c.l.b16 %v1070
    %v1327 = vunpack.c.l.b16 %v1071
    %v1328 = vunpack.c.l.b16 %v1072
    %v1329 = vunpack.c.l.b16 %v1073
    %v1330 = vunpack.c.l.b16 %v1074
    %v1331 = vunpack.c.l.b16 %v1075
    %v1332 = vunpack.c.l.b16 %v1076
    %v1333 = vunpack.c.l.b16 %v1077
    %v1334 = vunpack.c.l.b16 %v1078
    %v1335 = vunpack.c.l.b16 %v1079
    %v1336 = vunpack.c.l.b16 %v1080
    %v1337 = vunpack.c.l.b16 %v1081
    %v1338 = vunpack.c.l.b16 %v1082
    %v1339 = vunpack.c.l.b16 %v1083
    %v1340 = vunpack.c.l.b16 %v1084
    %v1341 = vunpack.c.l.b16 %v1085
    %v1342 = vunpack.c.l.b16 %v1086
    %v1343 = vunpack.c.l.b16 %v1087
    %v1344 = vunpack.c.l.b16 %v1088
    %v1345 = vunpack.c.l.b16 %v1089
    %v1346 = vunpack.c.l.b16 %v1090
    %v1347 = vunpack.c.l.b16 %v1091
    %v1348 = vunpack.c.l.b16 %v1092
    %v1349 = vunpack.c.l.b16 %v1093
    %v1350 = vunpack.c.l.b16 %v1094
    %v1351 = vpack.c.b16 %v1224, %v1223
    %v1352 = vpack.c.b16 %v1226, %v1225
    %v1353 = vpack.c.b16 %v1228, %v1227
    %v1354 = vpack.c.b16 %v1230, %v1229
    %v1355 = vpack.c.b16 %v1232, %v1231
    %v1356 = vpack.c.b16 %v1234, %v1233
    %v1357 = vpack.c.b16 %v1236, %v1235
    %v1358 = vpack.c.b16 %v1238, %v1237
    %v1359 = vpack.c.b16 %v1240, %v1239
    %v1360 = vpack.c.b16 %v1242, %v1241
    %v1361 = vpack.c.b16 %v1244, %v1243
    %v1362 = vpack.c.b16 %v1246, %v1245
    %v1363 = vpack.c.b16 %v1248, %v1247
    %v1364 = vpack.c.b16 %v1250, %v1249
    %v1365 = vpack.c.b16 %v1252, %v1251
    %v1366 = vpack.c.b16 %v1254, %v1253
    %v1367 = vpack.c.b16 %v1256, %v1255
    %v1368 = vpack.c.b16 %v1258, %v1257
    %v1369 = vpack.c.b16 %v1260, %v1259
    %v1370 = vpack.c.b16 %v1262, %v1261
    %v1371 = vpack.c.b16 %v1264, %v1263
    %v1372 = vpack.c.b16 %v1266, %v1265
    %v1373 = vpack.c.b16 %v1268, %v1267
    %v1374 = vpack.c.b16 %v1270, %v1269
    %v1375 = vpack.c.b16 %v1272, %v1271
    %v1376 = vpack.c.b16 %v1274, %v1273
    %v1377 = vpack.c.b16 %v1276, %v1275
    %v1378 = vpack.c.b16 %v1278, %v1277
    %v1379 = vpack.c.b16 %v1280, %v1279
    %v1380 = vpack.c.b16 %v1282, %v1281
    %v1381 = vpack.c.b16 %v1284, %v1283
    %v1382 = vpack.c.b16 %v1286, %v1285
    %v1383 = vpack.c.b16 %v1288, %v1287
    %v1384 = vpack.c.b16 %v1290, %v1289
    %v1385 = vpack.c.b16 %v1292, %v1291
    %v1386 = vpack.c.b16 %v1294, %v1293
    %v1387 = vpack.c.b16 %v1296, %v1295
    %v1388 = vpack.c.b16 %v1298, %v1297
    %v1389 = vpack.c.b16 %v1300, %v1299
    %v1390 = vpack.c.b16 %v1302, %v1301
    %v1391 = vpack.c.b16 %v1304, %v1303
    %v1392 = vpack.c.b16 %v1306, %v1305
    %v1393 = vpack.c.b16 %v1308, %v1307
    %v1394 = vpack.c.b16 %v1310, %v1309
    %v1395 = vpack.c.b16 %v1312, %v1311
    %v1396 = vpack.c.b16 %v1314, %v1313
    %v1397 = vpack.c.b16 %v1316, %v1315
    %v1398 = vpack.c.b16 %v1318, %v1317
    %v1399 = vpack.c.b16 %v1320, %v1319
    %v1400 = vpack.c.b16 %v1322, %v1321
    %v1401 = vpack.c.b16 %v1324, %v1323
    %v1402 = vpack.c.b16 %v1326, %v1325
    %v1403 = vpack.c.b16 %v1328, %v1327
    %v1404 = vpack.c.b16 %v1330, %v1329
    %v1405 = vpack.c.b16 %v1332, %v1331
    %v1406 = vpack.c.b16 %v1334, %v1333
    %v1407 = vpack.c.b16 %v1336, %v1335
    %v1408 = vpack.c.b16 %v1338, %v1337
    %v1409 = vpack.c.b16 %v1340, %v1339
    %v1410 = vpack.c.b16 %v1342, %v1341
    %v1411 = vpack.c.b16 %v1344, %v1343
    %v1412 = vpack.c.b16 %v1346, %v1345
    %v1413 = vpack.c.b16 %v1348, %v1347
    %v1414 = vpack.c.b16 %v1350, %v1349
    %1479 = vmatprep.subr.bf16.mxu0 0
    %1480 = vmatpush1.bf16.msra.mxu0 %v1351
    %1481 = vmatprep.subr.bf16.mxu0 0
    %1482 = vmatpush1.bf16.msra.mxu0 %v1352
    %1483 = vmatprep.subr.bf16.mxu0 0
    %1484 = vmatpush1.bf16.msra.mxu0 %v1353
    %1485 = vmatprep.subr.bf16.mxu0 0
    %1486 = vmatpush1.bf16.msra.mxu0 %v1354
    %1487 = vmatprep.subr.bf16.mxu0 0
    %1488 = vmatpush1.bf16.msra.mxu0 %v1355
    %1489 = vmatprep.subr.bf16.mxu0 0
    %1490 = vmatpush1.bf16.msra.mxu0 %v1356
    %1491 = vmatprep.subr.bf16.mxu0 0
    %1492 = vmatpush1.bf16.msra.mxu0 %v1357
    %1493 = vmatprep.subr.bf16.mxu0 0
    %1494 = vmatpush1.bf16.msra.mxu0 %v1358
    %1495 = vmatprep.subr.bf16.mxu0 0
    %1496 = vmatpush1.bf16.msra.mxu0 %v1359
    %1497 = vmatprep.subr.bf16.mxu0 0
    %1498 = vmatpush1.bf16.msra.mxu0 %v1360
    %1499 = vmatprep.subr.bf16.mxu0 0
    %1500 = vmatpush1.bf16.msra.mxu0 %v1361
    %1501 = vmatprep.subr.bf16.mxu0 0
    %1502 = vmatpush1.bf16.msra.mxu0 %v1362
    %1503 = vmatprep.subr.bf16.mxu0 0
    %1504 = vmatpush1.bf16.msra.mxu0 %v1363
    %1505 = vmatprep.subr.bf16.mxu0 0
    %1506 = vmatpush1.bf16.msra.mxu0 %v1364
    %1507 = vmatprep.subr.bf16.mxu0 0
    %1508 = vmatpush1.bf16.msra.mxu0 %v1365
    %1509 = vmatprep.subr.bf16.mxu0 0
    %1510 = vmatpush1.bf16.msra.mxu0 %v1366
    %1511 = vmatprep.mubr.bf16.mxu0 %v960
    %1512 = vmatmul.mubr.bf16.gmra.mrb[0].mxu0 %v959
    %v1513 = vpop.f32.mrb[0].mxu0
    %v1514 = vadd.f32 0.0, %v1513
    %v1515 = vpop.f32.mrb[0].mxu0
    %v1516 = vpop.f32.mrb[0].mxu0
    %v1517 = vadd.f32 0.0, %v1516
    %v1518 = vpop.f32.mrb[0].mxu0
    %1519 = vdwg.mxu0
    %1520 = vmatprep.subr.bf16.mxu0 0
    %1521 = vmatpush1.bf16.msra.mxu0 %v1367
    %1522 = vmatprep.subr.bf16.mxu0 0
    %1523 = vmatpush1.bf16.msra.mxu0 %v1368
    %1524 = vmatprep.subr.bf16.mxu0 0
    %1525 = vmatpush1.bf16.msra.mxu0 %v1369
    %1526 = vmatprep.subr.bf16.mxu0 0
    %1527 = vmatpush1.bf16.msra.mxu0 %v1370
    %1528 = vmatprep.subr.bf16.mxu0 0
    %1529 = vmatpush1.bf16.msra.mxu0 %v1371
    %1530 = vmatprep.subr.bf16.mxu0 0
    %1531 = vmatpush1.bf16.msra.mxu0 %v1372
    %1532 = vmatprep.subr.bf16.mxu0 0
    %1533 = vmatpush1.bf16.msra.mxu0 %v1373
    %1534 = vmatprep.subr.bf16.mxu0 0
    %1535 = vmatpush1.bf16.msra.mxu0 %v1374
    %1536 = vmatprep.subr.bf16.mxu0 0
    %1537 = vmatpush1.bf16.msra.mxu0 %v1375
    %1538 = vmatprep.subr.bf16.mxu0 0
    %1539 = vmatpush1.bf16.msra.mxu0 %v1376
    %1540 = vmatprep.subr.bf16.mxu0 0
    %1541 = vmatpush1.bf16.msra.mxu0 %v1377
    %1542 = vmatprep.subr.bf16.mxu0 0
    %1543 = vmatpush1.bf16.msra.mxu0 %v1378
    %1544 = vmatprep.subr.bf16.mxu0 0
    %1545 = vmatpush1.bf16.msra.mxu0 %v1379
    %1546 = vmatprep.subr.bf16.mxu0 0
    %1547 = vmatpush1.bf16.msra.mxu0 %v1380
    %1548 = vmatprep.subr.bf16.mxu0 0
    %1549 = vmatpush1.bf16.msra.mxu0 %v1381
    %1550 = vmatprep.subr.bf16.mxu0 0
    %1551 = vmatpush1.bf16.msra.mxu0 %v1382
    %1552 = vmatprep.mubr.bf16.mxu0 %v962
    %1553 = vmatmul.mubr.bf16.gmra.mrb[0].mxu0 %v961
    %v1554 = vpop.f32.mrb[0].mxu0
    %v1555 = vadd.f32 %v1514, %v1554
    %v1556 = vpop.f32.mrb[0].mxu0
    %v1557 = vpop.f32.mrb[0].mxu0
    %v1558 = vadd.f32 %v1517, %v1557
    %v1559 = vpop.f32.mrb[0].mxu0
    %1560 = vdwg.mxu0
    %1561 = vmatprep.subr.bf16.mxu0 0
    %1562 = vmatpush1.bf16.msra.mxu0 %v1383
    %1563 = vmatprep.subr.bf16.mxu0 0
    %1564 = vmatpush1.bf16.msra.mxu0 %v1384
    %1565 = vmatprep.subr.bf16.mxu0 0
    %1566 = vmatpush1.bf16.msra.mxu0 %v1385
    %1567 = vmatprep.subr.bf16.mxu0 0
    %1568 = vmatpush1.bf16.msra.mxu0 %v1386
    %1569 = vmatprep.subr.bf16.mxu0 0
    %1570 = vmatpush1.bf16.msra.mxu0 %v1387
    %1571 = vmatprep.subr.bf16.mxu0 0
    %1572 = vmatpush1.bf16.msra.mxu0 %v1388
    %1573 = vmatprep.subr.bf16.mxu0 0
    %1574 = vmatpush1.bf16.msra.mxu0 %v1389
    %1575 = vmatprep.subr.bf16.mxu0 0
    %1576 = vmatpush1.bf16.msra.mxu0 %v1390
    %1577 = vmatprep.subr.bf16.mxu0 0
    %1578 = vmatpush1.bf16.msra.mxu0 %v1391
    %1579 = vmatprep.subr.bf16.mxu0 0
    %1580 = vmatpush1.bf16.msra.mxu0 %v1392
    %1581 = vmatprep.subr.bf16.mxu0 0
    %1582 = vmatpush1.bf16.msra.mxu0 %v1393
    %1583 = vmatprep.subr.bf16.mxu0 0
    %1584 = vmatpush1.bf16.msra.mxu0 %v1394
    %1585 = vmatprep.subr.bf16.mxu0 0
    %1586 = vmatpush1.bf16.msra.mxu0 %v1395
    %1587 = vmatprep.subr.bf16.mxu0 0
    %1588 = vmatpush1.bf16.msra.mxu0 %v1396
    %1589 = vmatprep.subr.bf16.mxu0 0
    %1590 = vmatpush1.bf16.msra.mxu0 %v1397
    %1591 = vmatprep.subr.bf16.mxu0 0
    %1592 = vmatpush1.bf16.msra.mxu0 %v1398
    %1593 = vmatprep.mubr.bf16.mxu0 %v964
    %1594 = vmatmul.mubr.bf16.gmra.mrb[0].mxu0 %v963
    %v1595 = vpop.f32.mrb[0].mxu0
    %v1596 = vadd.f32 %v1555, %v1595
    %v1597 = vpop.f32.mrb[0].mxu0
    %v1598 = vpop.f32.mrb[0].mxu0
    %v1599 = vadd.f32 %v1558, %v1598
    %v1600 = vpop.f32.mrb[0].mxu0
    %1601 = vdwg.mxu0
    %1602 = vmatprep.subr.bf16.mxu0 0
    %1603 = vmatpush1.bf16.msra.mxu0 %v1399
    %1604 = vmatprep.subr.bf16.mxu0 0
    %1605 = vmatpush1.bf16.msra.mxu0 %v1400
    %1606 = vmatprep.subr.bf16.mxu0 0
    %1607 = vmatpush1.bf16.msra.mxu0 %v1401
    %1608 = vmatprep.subr.bf16.mxu0 0
    %1609 = vmatpush1.bf16.msra.mxu0 %v1402
    %1610 = vmatprep.subr.bf16.mxu0 0
    %1611 = vmatpush1.bf16.msra.mxu0 %v1403
    %1612 = vmatprep.subr.bf16.mxu0 0
    %1613 = vmatpush1.bf16.msra.mxu0 %v1404
    %1614 = vmatprep.subr.bf16.mxu0 0
    %1615 = vmatpush1.bf16.msra.mxu0 %v1405
    %1616 = vmatprep.subr.bf16.mxu0 0
    %1617 = vmatpush1.bf16.msra.mxu0 %v1406
    %1618 = vmatprep.subr.bf16.mxu0 0
    %1619 = vmatpush1.bf16.msra.mxu0 %v1407
    %1620 = vmatprep.subr.bf16.mxu0 0
    %1621 = vmatpush1.bf16.msra.mxu0 %v1408
    %1622 = vmatprep.subr.bf16.mxu0 0
    %1623 = vmatpush1.bf16.msra.mxu0 %v1409
    %1624 = vmatprep.subr.bf16.mxu0 0
    %1625 = vmatpush1.bf16.msra.mxu0 %v1410
    %1626 = vmatprep.subr.bf16.mxu0 0
    %1627 = vmatpush1.bf16.msra.mxu0 %v1411
    %1628 = vmatprep.subr.bf16.mxu0 0
    %1629 = vmatpush1.bf16.msra.mxu0 %v1412
    %1630 = vmatprep.subr.bf16.mxu0 0
    %1631 = vmatpush1.bf16.msra.mxu0 %v1413
    %1632 = vmatprep.subr.bf16.mxu0 0
    %1633 = vmatpush1.bf16.msra.mxu0 %v1414
    %1634 = vmatprep.mubr.bf16.mxu0 %v966
    %1635 = vmatmul.mubr.bf16.gmra.mrb[0].mxu0 %v965
    %v1636 = vpop.f32.mrb[0].mxu0
    %v1637 = vadd.f32 %v1596, %v1636
    %v1638 = vpop.f32.mrb[0].mxu0
    %v1639 = vpop.f32.mrb[0].mxu0
    %v1640 = vadd.f32 %v1599, %v1639
    %v1641 = vpop.f32.mrb[0].mxu0
    %1642 = vdwg.mxu0
    %v1643 = vlaneseq
    %v1644 = vand.u32 %v1643, 127
    %vm1645 = vcmp.lt.s32.totalorder %v1644, 0
    %v1646 = vsub.s32 0, %v1644
    %v1647 = vsel %vm1645, %v1646, %v1644
    %v1648 = vshrl.u32 %v1647, 4
    %v1649 = vand.u32 %v1647, 15
    %v1650 = vsub.s32 0, %v1649
    %v1651 = vsel %vm1645, %v1650, %v1649
    %vm1652 = vcmp.ne.s32.totalorder %v1651, 0
    %vm1653 = vcmp.lt.s32.totalorder %v1651, 0
    %vm1654 = vmand %vm1653, %vm1652
    %v1655 = vadd.s32 %v1651, 16
    %v1656 = vsel %vm1654, %v1655, %v1651
    %vm1657 = vcmp.lt.s32.totalorder %v1656, 8
    %v1658 = vsel %vm1657, %v1637, -1e+30
    %v1659 = vsel %vm1657, %v1640, -1e+30
    %1660 = vmax.xlane.f32.xlu0 %v1658
    %v1661 = vpop.xlane.xlu0 %1660
    %1662 = vmax.xlane.f32.xlu0 %v1659
    %v1663 = vpop.xlane.xlu0 %1662
    %v1664 = vsub.f32 %v1658, %v1661
    %v1665 = vsub.f32 %v1659, %v1663
    %v1666 = vmul.f32 %v1664, 1.442695
    %v1667 = vpow.pop %v1666
    %v1668 = vmul.f32 %v1665, 1.442695
    %v1669 = vpow.pop %v1668
    %v1670 = vpack.c.bf16 %v1669, %v1667
    %v1671 = vld [vmem:[#allocation10] sm:$0xf]
    %v1672 = vld [vmem:[#allocation10 + $0x4] sm:$0xf]
    %v1673 = vld [vmem:[#allocation10 + $0x8] sm:$0xf]
    %v1674 = vld [vmem:[#allocation10 + $0xc] sm:$0xf]
    %v1675 = vld [vmem:[#allocation10 + $0x10] sm:$0xf]
    %v1676 = vld [vmem:[#allocation10 + $0x14] sm:$0xf]
    %v1677 = vld [vmem:[#allocation10 + $0x18] sm:$0xf]
    %v1678 = vld [vmem:[#allocation10 + $0x1c] sm:$0xf]
    %v1679 = vld [vmem:[#allocation10 + $0x20] sm:$0xf]
    %v1680 = vld [vmem:[#allocation10 + $0x24] sm:$0xf]
    %v1681 = vld [vmem:[#allocation10 + $0x28] sm:$0xf]
    %v1682 = vld [vmem:[#allocation10 + $0x2c] sm:$0xf]
    %v1683 = vld [vmem:[#allocation10 + $0x30] sm:$0xf]
    %v1684 = vld [vmem:[#allocation10 + $0x34] sm:$0xf]
    %v1685 = vld [vmem:[#allocation10 + $0x38] sm:$0xf]
    %v1686 = vld [vmem:[#allocation10 + $0x3c] sm:$0xf]
    %v1703 = vunpack.c.l.b16 %v1671
    %v1704 = vunpack.c.l.b16 %v1672
    %v1705 = vunpack.c.l.b16 %v1673
    %v1706 = vunpack.c.l.b16 %v1674
    %v1707 = vunpack.c.l.b16 %v1675
    %v1708 = vunpack.c.l.b16 %v1676
    %v1709 = vunpack.c.l.b16 %v1677
    %v1710 = vunpack.c.l.b16 %v1678
    %v1711 = vunpack.c.l.b16 %v1679
    %v1712 = vunpack.c.l.b16 %v1680
    %v1713 = vunpack.c.l.b16 %v1681
    %v1714 = vunpack.c.l.b16 %v1682
    %v1715 = vunpack.c.l.b16 %v1683
    %v1716 = vunpack.c.l.b16 %v1684
    %v1717 = vunpack.c.l.b16 %v1685
    %v1718 = vunpack.c.l.b16 %v1686
    %v1719 = vpack.c.b16 %v1704, %v1703
    %v1720 = vpack.c.b16 %v1706, %v1705
    %v1721 = vpack.c.b16 %v1708, %v1707
    %v1722 = vpack.c.b16 %v1710, %v1709
    %v1723 = vpack.c.b16 %v1712, %v1711
    %v1724 = vpack.c.b16 %v1714, %v1713
    %v1725 = vpack.c.b16 %v1716, %v1715
    %v1726 = vpack.c.b16 %v1718, %v1717
    %1735 = vmatprep.subr.bf16.mxu0 0
    %1736 = vmatpush1.bf16.msra.mxu0 %v1719
    %1737 = vmatprep.subr.bf16.mxu0 0
    %1738 = vmatpush1.bf16.msra.mxu0 %v1720
    %1739 = vmatprep.subr.bf16.mxu0 0
    %1740 = vmatpush1.bf16.msra.mxu0 %v1721
    %1741 = vmatprep.subr.bf16.mxu0 0
    %1742 = vmatpush1.bf16.msra.mxu0 %v1722
    %1743 = vmatprep.subr.bf16.mxu0 0
    %1744 = vmatpush1.bf16.msra.mxu0 %v1723
    %1745 = vmatprep.subr.bf16.mxu0 0
    %1746 = vmatpush1.bf16.msra.mxu0 %v1724
    %1747 = vmatprep.subr.bf16.mxu0 0
    %1748 = vmatpush1.bf16.msra.mxu0 %v1725
    %1749 = vmatprep.subr.bf16.mxu0 0
    %1750 = vmatpush1.bf16.msra.mxu0 %v1726
    %1751 = vmatprep.subr.bf16.mxu0 0
    %1752 = vmatpush1.bf16.msra.mxu0 0
    %1753 = vmatprep.subr.bf16.mxu0 0
    %1754 = vmatpush1.bf16.msra.mxu0 0
    %1755 = vmatprep.subr.bf16.mxu0 0
    %1756 = vmatpush1.bf16.msra.mxu0 0
    %1757 = vmatprep.subr.bf16.mxu0 0
    %1758 = vmatpush1.bf16.msra.mxu0 0
    %1759 = vmatprep.subr.bf16.mxu0 0
    %1760 = vmatpush1.bf16.msra.mxu0 0
    %1761 = vmatprep.subr.bf16.mxu0 0
    %1762 = vmatpush1.bf16.msra.mxu0 0
    %1763 = vmatprep.subr.bf16.mxu0 0
    %1764 = vmatpush1.bf16.msra.mxu0 0
    %1765 = vmatprep.subr.bf16.mxu0 0
    %1766 = vmatpush1.bf16.msra.mxu0 0
    %1767 = vmatprep.mubr.bf16.mxu0 0
    %1768 = vmatmul.mubr.bf16.gmra.mrb[0].mxu0 %v1670
    %v1769 = vpop.f32.mrb[0].mxu0
    %v1770 = vadd.f32 0.0, %v1769
    %v1771 = vpop.f32.mrb[0].mxu0
    %v1772 = vpop.f32.mrb[0].mxu0
    %v1773 = vadd.f32 0.0, %v1772
    %v1774 = vpop.f32.mrb[0].mxu0
    %1775 = vdwg.mxu0
    %v1776 = vld [vmem:[#allocation11] sm:$0xff]
    %v1777 = vld [vmem:[#allocation11 + $0x8] sm:$0xff]
    %v1778 = vld [vmem:[#allocation11 + $0x10] sm:$0xff]
    %v1779 = vld [vmem:[#allocation11 + $0x18] sm:$0xff]
    %v1780 = vld [vmem:[#allocation11 + $0x20] sm:$0xff]
    %v1781 = vld [vmem:[#allocation11 + $0x28] sm:$0xff]
    %v1782 = vld [vmem:[#allocation11 + $0x30] sm:$0xff]
    %v1783 = vld [vmem:[#allocation11 + $0x38] sm:$0xff]
    %v1784 = vld [vmem:[#allocation11 + $0x40] sm:$0xff]
    %v1785 = vld [vmem:[#allocation11 + $0x48] sm:$0xff]
    %v1786 = vld [vmem:[#allocation11 + $0x50] sm:$0xff]
    %v1787 = vld [vmem:[#allocation11 + $0x58] sm:$0xff]
    %v1788 = vld [vmem:[#allocation11 + $0x60] sm:$0xff]
    %v1789 = vld [vmem:[#allocation11 + $0x68] sm:$0xff]
    %v1790 = vld [vmem:[#allocation11 + $0x70] sm:$0xff]
    %v1791 = vld [vmem:[#allocation11 + $0x78] sm:$0xff]
    %v1792 = vld [vmem:[#allocation11 + $0x80] sm:$0xff]
    %v1793 = vld [vmem:[#allocation11 + $0x88] sm:$0xff]
    %v1794 = vld [vmem:[#allocation11 + $0x90] sm:$0xff]
    %v1795 = vld [vmem:[#allocation11 + $0x98] sm:$0xff]
    %v1796 = vld [vmem:[#allocation11 + $0xa0] sm:$0xff]
    %v1797 = vld [vmem:[#allocation11 + $0xa8] sm:$0xff]
    %v1798 = vld [vmem:[#allocation11 + $0xb0] sm:$0xff]
    %v1799 = vld [vmem:[#allocation11 + $0xb8] sm:$0xff]
    %v1800 = vld [vmem:[#allocation11 + $0xc0] sm:$0xff]
    %v1801 = vld [vmem:[#allocation11 + $0xc8] sm:$0xff]
    %v1802 = vld [vmem:[#allocation11 + $0xd0] sm:$0xff]
    %v1803 = vld [vmem:[#allocation11 + $0xd8] sm:$0xff]
    %v1804 = vld [vmem:[#allocation11 + $0xe0] sm:$0xff]
    %v1805 = vld [vmem:[#allocation11 + $0xe8] sm:$0xff]
    %v1806 = vld [vmem:[#allocation11 + $0xf0] sm:$0xff]
    %v1807 = vld [vmem:[#allocation11 + $0xf8] sm:$0xff]
    %v1808 = vld [vmem:[#allocation11 + $0x100] sm:$0xff]
    %v1809 = vld [vmem:[#allocation11 + $0x108] sm:$0xff]
    %v1810 = vld [vmem:[#allocation11 + $0x110] sm:$0xff]
    %v1811 = vld [vmem:[#allocation11 + $0x118] sm:$0xff]
    %v1812 = vld [vmem:[#allocation11 + $0x120] sm:$0xff]
    %v1813 = vld [vmem:[#allocation11 + $0x128] sm:$0xff]
    %v1814 = vld [vmem:[#allocation11 + $0x130] sm:$0xff]
    %v1815 = vld [vmem:[#allocation11 + $0x138] sm:$0xff]
    %v1816 = vld [vmem:[#allocation11 + $0x140] sm:$0xff]
    %v1817 = vld [vmem:[#allocation11 + $0x148] sm:$0xff]
    %v1818 = vld [vmem:[#allocation11 + $0x150] sm:$0xff]
    %v1819 = vld [vmem:[#allocation11 + $0x158] sm:$0xff]
    %v1820 = vld [vmem:[#allocation11 + $0x160] sm:$0xff]
    %v1821 = vld [vmem:[#allocation11 + $0x168] sm:$0xff]
    %v1822 = vld [vmem:[#allocation11 + $0x170] sm:$0xff]
    %v1823 = vld [vmem:[#allocation11 + $0x178] sm:$0xff]
    %v1824 = vld [vmem:[#allocation11 + $0x180] sm:$0xff]
    %v1825 = vld [vmem:[#allocation11 + $0x188] sm:$0xff]
    %v1826 = vld [vmem:[#allocation11 + $0x190] sm:$0xff]
    %v1827 = vld [vmem:[#allocation11 + $0x198] sm:$0xff]
    %v1828 = vld [vmem:[#allocation11 + $0x1a0] sm:$0xff]
    %v1829 = vld [vmem:[#allocation11 + $0x1a8] sm:$0xff]
    %v1830 = vld [vmem:[#allocation11 + $0x1b0] sm:$0xff]
    %v1831 = vld [vmem:[#allocation11 + $0x1b8] sm:$0xff]
    %v1832 = vld [vmem:[#allocation11 + $0x1c0] sm:$0xff]
    %v1833 = vld [vmem:[#allocation11 + $0x1c8] sm:$0xff]
    %v1834 = vld [vmem:[#allocation11 + $0x1d0] sm:$0xff]
    %v1835 = vld [vmem:[#allocation11 + $0x1d8] sm:$0xff]
    %v1836 = vld [vmem:[#allocation11 + $0x1e0] sm:$0xff]
    %v1837 = vld [vmem:[#allocation11 + $0x1e8] sm:$0xff]
    %v1838 = vld [vmem:[#allocation11 + $0x1f0] sm:$0xff]
    %v1839 = vld [vmem:[#allocation11 + $0x1f8] sm:$0xff]
    %v1904 = vunpack.c.l.b16 %v1776
    %v1905 = vunpack.c.h.b16 %v1776
    %v1906 = vunpack.c.l.b16 %v1777
    %v1907 = vunpack.c.h.b16 %v1777
    %v1908 = vunpack.c.l.b16 %v1778
    %v1909 = vunpack.c.h.b16 %v1778
    %v1910 = vunpack.c.l.b16 %v1779
    %v1911 = vunpack.c.h.b16 %v1779
    %v1912 = vunpack.c.l.b16 %v1780
    %v1913 = vunpack.c.h.b16 %v1780
    %v1914 = vunpack.c.l.b16 %v1781
    %v1915 = vunpack.c.h.b16 %v1781
    %v1916 = vunpack.c.l.b16 %v1782
    %v1917 = vunpack.c.h.b16 %v1782
    %v1918 = vunpack.c.l.b16 %v1783
    %v1919 = vunpack.c.h.b16 %v1783
    %v1920 = vunpack.c.l.b16 %v1784
    %v1921 = vunpack.c.h.b16 %v1784
    %v1922 = vunpack.c.l.b16 %v1785
    %v1923 = vunpack.c.h.b16 %v1785
    %v1924 = vunpack.c.l.b16 %v1786
    %v1925 = vunpack.c.h.b16 %v1786
    %v1926 = vunpack.c.l.b16 %v1787
    %v1927 = vunpack.c.h.b16 %v1787
    %v1928 = vunpack.c.l.b16 %v1788
    %v1929 = vunpack.c.h.b16 %v1788
    %v1930 = vunpack.c.l.b16 %v1789
    %v1931 = vunpack.c.h.b16 %v1789
    %v1932 = vunpack.c.l.b16 %v1790
    %v1933 = vunpack.c.h.b16 %v1790
    %v1934 = vunpack.c.l.b16 %v1791
    %v1935 = vunpack.c.h.b16 %v1791
    %v1936 = vunpack.c.l.b16 %v1792
    %v1937 = vunpack.c.h.b16 %v1792
    %v1938 = vunpack.c.l.b16 %v1793
    %v1939 = vunpack.c.h.b16 %v1793
    %v1940 = vunpack.c.l.b16 %v1794
    %v1941 = vunpack.c.h.b16 %v1794
    %v1942 = vunpack.c.l.b16 %v1795
    %v1943 = vunpack.c.h.b16 %v1795
    %v1944 = vunpack.c.l.b16 %v1796
    %v1945 = vunpack.c.h.b16 %v1796
    %v1946 = vunpack.c.l.b16 %v1797
    %v1947 = vunpack.c.h.b16 %v1797
    %v1948 = vunpack.c.l.b16 %v1798
    %v1949 = vunpack.c.h.b16 %v1798
    %v1950 = vunpack.c.l.b16 %v1799
    %v1951 = vunpack.c.h.b16 %v1799
    %v1952 = vunpack.c.l.b16 %v1800
    %v1953 = vunpack.c.h.b16 %v1800
    %v1954 = vunpack.c.l.b16 %v1801
    %v1955 = vunpack.c.h.b16 %v1801
    %v1956 = vunpack.c.l.b16 %v1802
    %v1957 = vunpack.c.h.b16 %v1802
    %v1958 = vunpack.c.l.b16 %v1803
    %v1959 = vunpack.c.h.b16 %v1803
    %v1960 = vunpack.c.l.b16 %v1804
    %v1961 = vunpack.c.h.b16 %v1804
    %v1962 = vunpack.c.l.b16 %v1805
    %v1963 = vunpack.c.h.b16 %v1805
    %v1964 = vunpack.c.l.b16 %v1806
    %v1965 = vunpack.c.h.b16 %v1806
    %v1966 = vunpack.c.l.b16 %v1807
    %v1967 = vunpack.c.h.b16 %v1807
    %v1968 = vunpack.c.l.b16 %v1808
    %v1969 = vunpack.c.h.b16 %v1808
    %v1970 = vunpack.c.l.b16 %v1809
    %v1971 = vunpack.c.h.b16 %v1809
    %v1972 = vunpack.c.l.b16 %v1810
    %v1973 = vunpack.c.h.b16 %v1810
    %v1974 = vunpack.c.l.b16 %v1811
    %v1975 = vunpack.c.h.b16 %v1811
    %v1976 = vunpack.c.l.b16 %v1812
    %v1977 = vunpack.c.h.b16 %v1812
    %v1978 = vunpack.c.l.b16 %v1813
    %v1979 = vunpack.c.h.b16 %v1813
    %v1980 = vunpack.c.l.b16 %v1814
    %v1981 = vunpack.c.h.b16 %v1814
    %v1982 = vunpack.c.l.b16 %v1815
    %v1983 = vunpack.c.h.b16 %v1815
    %v1984 = vunpack.c.l.b16 %v1816
    %v1985 = vunpack.c.h.b16 %v1816
    %v1986 = vunpack.c.l.b16 %v1817
    %v1987 = vunpack.c.h.b16 %v1817
    %v1988 = vunpack.c.l.b16 %v1818
    %v1989 = vunpack.c.h.b16 %v1818
    %v1990 = vunpack.c.l.b16 %v1819
    %v1991 = vunpack.c.h.b16 %v1819
    %v1992 = vunpack.c.l.b16 %v1820
    %v1993 = vunpack.c.h.b16 %v1820
    %v1994 = vunpack.c.l.b16 %v1821
    %v1995 = vunpack.c.h.b16 %v1821
    %v1996 = vunpack.c.l.b16 %v1822
    %v1997 = vunpack.c.h.b16 %v1822
    %v1998 = vunpack.c.l.b16 %v1823
    %v1999 = vunpack.c.h.b16 %v1823
    %v2000 = vunpack.c.l.b16 %v1824
    %v2001 = vunpack.c.h.b16 %v1824
    %v2002 = vunpack.c.l.b16 %v1825
    %v2003 = vunpack.c.h.b16 %v1825
    %v2004 = vunpack.c.l.b16 %v1826
    %v2005 = vunpack.c.h.b16 %v1826
    %v2006 = vunpack.c.l.b16 %v1827
    %v2007 = vunpack.c.h.b16 %v1827
    %v2008 = vunpack.c.l.b16 %v1828
    %v2009 = vunpack.c.h.b16 %v1828
    %v2010 = vunpack.c.l.b16 %v1829
    %v2011 = vunpack.c.h.b16 %v1829
    %v2012 = vunpack.c.l.b16 %v1830
    %v2013 = vunpack.c.h.b16 %v1830
    %v2014 = vunpack.c.l.b16 %v1831
    %v2015 = vunpack.c.h.b16 %v1831
    %v2016 = vunpack.c.l.b16 %v1832
    %v2017 = vunpack.c.h.b16 %v1832
    %v2018 = vunpack.c.l.b16 %v1833
    %v2019 = vunpack.c.h.b16 %v1833
    %v2020 = vunpack.c.l.b16 %v1834
    %v2021 = vunpack.c.h.b16 %v1834
    %v2022 = vunpack.c.l.b16 %v1835
    %v2023 = vunpack.c.h.b16 %v1835
    %v2024 = vunpack.c.l.b16 %v1836
    %v2025 = vunpack.c.h.b16 %v1836
    %v2026 = vunpack.c.l.b16 %v1837
    %v2027 = vunpack.c.h.b16 %v1837
    %v2028 = vunpack.c.l.b16 %v1838
    %v2029 = vunpack.c.h.b16 %v1838
    %v2030 = vunpack.c.l.b16 %v1839
    %v2031 = vunpack.c.h.b16 %v1839
    %v2032 = vpack.c.b16 %v1912, %v1904
    %v2033 = vpack.c.b16 %v1913, %v1905
    %v2034 = vpack.c.b16 %v1914, %v1906
    %v2035 = vpack.c.b16 %v1915, %v1907
    %v2036 = vpack.c.b16 %v1916, %v1908
    %v2037 = vpack.c.b16 %v1917, %v1909
    %v2038 = vpack.c.b16 %v1918, %v1910
    %v2039 = vpack.c.b16 %v1919, %v1911
    %v2040 = vpack.c.b16 %v1928, %v1920
    %v2041 = vpack.c.b16 %v1929, %v1921
    %v2042 = vpack.c.b16 %v1930, %v1922
    %v2043 = vpack.c.b16 %v1931, %v1923
    %v2044 = vpack.c.b16 %v1932, %v1924
    %v2045 = vpack.c.b16 %v1933, %v1925
    %v2046 = vpack.c.b16 %v1934, %v1926
    %v2047 = vpack.c.b16 %v1935, %v1927
    %v2048 = vpack.c.b16 %v1944, %v1936
    %v2049 = vpack.c.b16 %v1945, %v1937
    %v2050 = vpack.c.b16 %v1946, %v1938
    %v2051 = vpack.c.b16 %v1947, %v1939
    %v2052 = vpack.c.b16 %v1948, %v1940
    %v2053 = vpack.c.b16 %v1949, %v1941
    %v2054 = vpack.c.b16 %v1950, %v1942
    %v2055 = vpack.c.b16 %v1951, %v1943
    %v2056 = vpack.c.b16 %v1960, %v1952
    %v2057 = vpack.c.b16 %v1961, %v1953
    %v2058 = vpack.c.b16 %v1962, %v1954
    %v2059 = vpack.c.b16 %v1963, %v1955
    %v2060 = vpack.c.b16 %v1964, %v1956
    %v2061 = vpack.c.b16 %v1965, %v1957
    %v2062 = vpack.c.b16 %v1966, %v1958
    %v2063 = vpack.c.b16 %v1967, %v1959
    %v2064 = vpack.c.b16 %v1976, %v1968
    %v2065 = vpack.c.b16 %v1977, %v1969
    %v2066 = vpack.c.b16 %v1978, %v1970
    %v2067 = vpack.c.b16 %v1979, %v1971
    %v2068 = vpack.c.b16 %v1980, %v1972
    %v2069 = vpack.c.b16 %v1981, %v1973
    %v2070 = vpack.c.b16 %v1982, %v1974
    %v2071 = vpack.c.b16 %v1983, %v1975
    %v2072 = vpack.c.b16 %v1992, %v1984
    %v2073 = vpack.c.b16 %v1993, %v1985
    %v2074 = vpack.c.b16 %v1994, %v1986
    %v2075 = vpack.c.b16 %v1995, %v1987
    %v2076 = vpack.c.b16 %v1996, %v1988
    %v2077 = vpack.c.b16 %v1997, %v1989
    %v2078 = vpack.c.b16 %v1998, %v1990
    %v2079 = vpack.c.b16 %v1999, %v1991
    %v2080 = vpack.c.b16 %v2008, %v2000
    %v2081 = vpack.c.b16 %v2009, %v2001
    %v2082 = vpack.c.b16 %v2010, %v2002
    %v2083 = vpack.c.b16 %v2011, %v2003
    %v2084 = vpack.c.b16 %v2012, %v2004
    %v2085 = vpack.c.b16 %v2013, %v2005
    %v2086 = vpack.c.b16 %v2014, %v2006
    %v2087 = vpack.c.b16 %v2015, %v2007
    %v2088 = vpack.c.b16 %v2024, %v2016
    %v2089 = vpack.c.b16 %v2025, %v2017
    %v2090 = vpack.c.b16 %v2026, %v2018
    %v2091 = vpack.c.b16 %v2027, %v2019
    %v2092 = vpack.c.b16 %v2028, %v2020
    %v2093 = vpack.c.b16 %v2029, %v2021
    %v2094 = vpack.c.b16 %v2030, %v2022
    %v2095 = vpack.c.b16 %v2031, %v2023
    %2160 = vmatprep.subr.bf16.mxu0 %v2033
    %2161 = vmatpush1.bf16.msra.mxu0 %v2032
    %2162 = vmatprep.subr.bf16.mxu0 %v2041
    %2163 = vmatpush1.bf16.msra.mxu0 %v2040
    %2164 = vmatprep.subr.bf16.mxu0 %v2049
    %2165 = vmatpush1.bf16.msra.mxu0 %v2048
    %2166 = vmatprep.subr.bf16.mxu0 %v2057
    %2167 = vmatpush1.bf16.msra.mxu0 %v2056
    %2168 = vmatprep.subr.bf16.mxu0 %v2065
    %2169 = vmatpush1.bf16.msra.mxu0 %v2064
    %2170 = vmatprep.subr.bf16.mxu0 %v2073
    %2171 = vmatpush1.bf16.msra.mxu0 %v2072
    %2172 = vmatprep.subr.bf16.mxu0 %v2081
    %2173 = vmatpush1.bf16.msra.mxu0 %v2080
    %2174 = vmatprep.subr.bf16.mxu0 %v2089
    %2175 = vmatpush1.bf16.msra.mxu0 %v2088
    %2176 = vmatprep.subr.bf16.mxu0 0
    %2177 = vmatpush1.bf16.msra.mxu0 0
    %2178 = vmatprep.subr.bf16.mxu0 0
    %2179 = vmatpush1.bf16.msra.mxu0 0
    %2180 = vmatprep.subr.bf16.mxu0 0
    %2181 = vmatpush1.bf16.msra.mxu0 0
    %2182 = vmatprep.subr.bf16.mxu0 0
    %2183 = vmatpush1.bf16.msra.mxu0 0
    %2184 = vmatprep.subr.bf16.mxu0 0
    %2185 = vmatpush1.bf16.msra.mxu0 0
    %2186 = vmatprep.subr.bf16.mxu0 0
    %2187 = vmatpush1.bf16.msra.mxu0 0
    %2188 = vmatprep.subr.bf16.mxu0 0
    %2189 = vmatpush1.bf16.msra.mxu0 0
    %2190 = vmatprep.subr.bf16.mxu0 0
    %2191 = vmatpush1.bf16.msra.mxu0 0
    %2192 = vmatprep.mubr.bf16.mxu0 0
    %2193 = vmatmul.mubr.bf16.gmra.mrb[0].mxu0 %v1670
    %v2194 = vpop.f32.mrb[0].mxu0
    %v2195 = vadd.f32 0.0, %v2194
    %v2196 = vpop.f32.mrb[0].mxu0
    %v2197 = vadd.f32 0.0, %v2196
    %v2198 = vpop.f32.mrb[0].mxu0
    %v2199 = vadd.f32 0.0, %v2198
    %v2200 = vpop.f32.mrb[0].mxu0
    %v2201 = vadd.f32 0.0, %v2200
    %2202 = vdwg.mxu0
    %2203 = vmatprep.subr.bf16.mxu0 %v2035
    %2204 = vmatpush1.bf16.msra.mxu0 %v2034
    %2205 = vmatprep.subr.bf16.mxu0 %v2043
    %2206 = vmatpush1.bf16.msra.mxu0 %v2042
    %2207 = vmatprep.subr.bf16.mxu0 %v2051
    %2208 = vmatpush1.bf16.msra.mxu0 %v2050
    %2209 = vmatprep.subr.bf16.mxu0 %v2059
    %2210 = vmatpush1.bf16.msra.mxu0 %v2058
    %2211 = vmatprep.subr.bf16.mxu0 %v2067
    %2212 = vmatpush1.bf16.msra.mxu0 %v2066
    %2213 = vmatprep.subr.bf16.mxu0 %v2075
    %2214 = vmatpush1.bf16.msra.mxu0 %v2074
    %2215 = vmatprep.subr.bf16.mxu0 %v2083
    %2216 = vmatpush1.bf16.msra.mxu0 %v2082
    %2217 = vmatprep.subr.bf16.mxu0 %v2091
    %2218 = vmatpush1.bf16.msra.mxu0 %v2090
    %2219 = vmatprep.subr.bf16.mxu0 0
    %2220 = vmatpush1.bf16.msra.mxu0 0
    %2221 = vmatprep.subr.bf16.mxu0 0
    %2222 = vmatpush1.bf16.msra.mxu0 0
    %2223 = vmatprep.subr.bf16.mxu0 0
    %2224 = vmatpush1.bf16.msra.mxu0 0
    %2225 = vmatprep.subr.bf16.mxu0 0
    %2226 = vmatpush1.bf16.msra.mxu0 0
    %2227 = vmatprep.subr.bf16.mxu0 0
    %2228 = vmatpush1.bf16.msra.mxu0 0
    %2229 = vmatprep.subr.bf16.mxu0 0
    %2230 = vmatpush1.bf16.msra.mxu0 0
    %2231 = vmatprep.subr.bf16.mxu0 0
    %2232 = vmatpush1.bf16.msra.mxu0 0
    %2233 = vmatprep.subr.bf16.mxu0 0
    %2234 = vmatpush1.bf16.msra.mxu0 0
    %2235 = vmatprep.mubr.bf16.mxu0 0
    %2236 = vmatmul.mubr.bf16.gmra.mrb[0].mxu0 %v1670
    %v2237 = vpop.f32.mrb[0].mxu0
    %v2238 = vadd.f32 0.0, %v2237
    %v2239 = vpop.f32.mrb[0].mxu0
    %v2240 = vadd.f32 0.0, %v2239
    %v2241 = vpop.f32.mrb[0].mxu0
    %v2242 = vadd.f32 0.0, %v2241
    %v2243 = vpop.f32.mrb[0].mxu0
    %v2244 = vadd.f32 0.0, %v2243
    %2245 = vdwg.mxu0
    %2246 = vmatprep.subr.bf16.mxu0 %v2037
    %2247 = vmatpush1.bf16.msra.mxu0 %v2036
    %2248 = vmatprep.subr.bf16.mxu0 %v2045
    %2249 = vmatpush1.bf16.msra.mxu0 %v2044
    %2250 = vmatprep.subr.bf16.mxu0 %v2053
    %2251 = vmatpush1.bf16.msra.mxu0 %v2052
    %2252 = vmatprep.subr.bf16.mxu0 %v2061
    %2253 = vmatpush1.bf16.msra.mxu0 %v2060
    %2254 = vmatprep.subr.bf16.mxu0 %v2069
    %2255 = vmatpush1.bf16.msra.mxu0 %v2068
    %2256 = vmatprep.subr.bf16.mxu0 %v2077
    %2257 = vmatpush1.bf16.msra.mxu0 %v2076
    %2258 = vmatprep.subr.bf16.mxu0 %v2085
    %2259 = vmatpush1.bf16.msra.mxu0 %v2084
    %2260 = vmatprep.subr.bf16.mxu0 %v2093
    %2261 = vmatpush1.bf16.msra.mxu0 %v2092
    %2262 = vmatprep.subr.bf16.mxu0 0
    %2263 = vmatpush1.bf16.msra.mxu0 0
    %2264 = vmatprep.subr.bf16.mxu0 0
    %2265 = vmatpush1.bf16.msra.mxu0 0
    %2266 = vmatprep.subr.bf16.mxu0 0
    %2267 = vmatpush1.bf16.msra.mxu0 0
    %2268 = vmatprep.subr.bf16.mxu0 0
    %2269 = vmatpush1.bf16.msra.mxu0 0
    %2270 = vmatprep.subr.bf16.mxu0 0
    %2271 = vmatpush1.bf16.msra.mxu0 0
    %2272 = vmatprep.subr.bf16.mxu0 0
    %2273 = vmatpush1.bf16.msra.mxu0 0
    %2274 = vmatprep.subr.bf16.mxu0 0
    %2275 = vmatpush1.bf16.msra.mxu0 0
    %2276 = vmatprep.subr.bf16.mxu0 0
    %2277 = vmatpush1.bf16.msra.mxu0 0
    %2278 = vmatprep.mubr.bf16.mxu0 0
    %2279 = vmatmul.mubr.bf16.gmra.mrb[0].mxu0 %v1670
    %v2280 = vpop.f32.mrb[0].mxu0
    %v2281 = vadd.f32 0.0, %v2280
    %v2282 = vpop.f32.mrb[0].mxu0
    %v2283 = vadd.f32 0.0, %v2282
    %v2284 = vpop.f32.mrb[0].mxu0
    %v2285 = vadd.f32 0.0, %v2284
    %v2286 = vpop.f32.mrb[0].mxu0
    %v2287 = vadd.f32 0.0, %v2286
    %2288 = vdwg.mxu0
    %2289 = vmatprep.subr.bf16.mxu0 %v2039
    %2290 = vmatpush1.bf16.msra.mxu0 %v2038
    %2291 = vmatprep.subr.bf16.mxu0 %v2047
    %2292 = vmatpush1.bf16.msra.mxu0 %v2046
    %2293 = vmatprep.subr.bf16.mxu0 %v2055
    %2294 = vmatpush1.bf16.msra.mxu0 %v2054
    %2295 = vmatprep.subr.bf16.mxu0 %v2063
    %2296 = vmatpush1.bf16.msra.mxu0 %v2062
    %2297 = vmatprep.subr.bf16.mxu0 %v2071
    %2298 = vmatpush1.bf16.msra.mxu0 %v2070
    %2299 = vmatprep.subr.bf16.mxu0 %v2079
    %2300 = vmatpush1.bf16.msra.mxu0 %v2078
    %2301 = vmatprep.subr.bf16.mxu0 %v2087
    %2302 = vmatpush1.bf16.msra.mxu0 %v2086
    %2303 = vmatprep.subr.bf16.mxu0 %v2095
    %2304 = vmatpush1.bf16.msra.mxu0 %v2094
    %2305 = vmatprep.subr.bf16.mxu0 0
    %2306 = vmatpush1.bf16.msra.mxu0 0
    %2307 = vmatprep.subr.bf16.mxu0 0
    %2308 = vmatpush1.bf16.msra.mxu0 0
    %2309 = vmatprep.subr.bf16.mxu0 0
    %2310 = vmatpush1.bf16.msra.mxu0 0
    %2311 = vmatprep.subr.bf16.mxu0 0
    %2312 = vmatpush1.bf16.msra.mxu0 0
    %2313 = vmatprep.subr.bf16.mxu0 0
    %2314 = vmatpush1.bf16.msra.mxu0 0
    %2315 = vmatprep.subr.bf16.mxu0 0
    %2316 = vmatpush1.bf16.msra.mxu0 0
    %2317 = vmatprep.subr.bf16.mxu0 0
    %2318 = vmatpush1.bf16.msra.mxu0 0
    %2319 = vmatprep.subr.bf16.mxu0 0
    %2320 = vmatpush1.bf16.msra.mxu0 0
    %2321 = vmatprep.mubr.bf16.mxu0 0
    %2322 = vmatmul.mubr.bf16.gmra.mrb[0].mxu0 %v1670
    %v2323 = vpop.f32.mrb[0].mxu0
    %v2324 = vadd.f32 0.0, %v2323
    %v2325 = vpop.f32.mrb[0].mxu0
    %v2326 = vadd.f32 0.0, %v2325
    %v2327 = vpop.f32.mrb[0].mxu0
    %v2328 = vadd.f32 0.0, %v2327
    %v2329 = vpop.f32.mrb[0].mxu0
    %v2330 = vadd.f32 0.0, %v2329
    %2331 = vdwg.mxu0
    %v2332 = vpack.c.bf16 %v2199, %v2195
    %v2333 = vpack.c.bf16 %v2201, %v2197
    %v2334 = vpack.c.bf16 %v2242, %v2238
    %v2335 = vpack.c.bf16 %v2244, %v2240
    %v2336 = vpack.c.bf16 %v2285, %v2281
    %v2337 = vpack.c.bf16 %v2287, %v2283
    %v2338 = vpack.c.bf16 %v2328, %v2324
    %v2339 = vpack.c.bf16 %v2330, %v2326
    %v2340 = vmul.bf16 %v2332, %v394
    %v2341 = vmul.bf16 %v2333, %v394
    %v2342 = vmul.bf16 %v2334, %v394
    %v2343 = vmul.bf16 %v2335, %v394
    %v2344 = vmul.bf16 %v2336, %v394
    %v2345 = vmul.bf16 %v2337, %v394
    %v2346 = vmul.bf16 %v2338, %v394
    %v2347 = vmul.bf16 %v2339, %v394
    %v2348 = vld [vmem:[#allocation13] sm:$0xf]
    %v2349 = vld [vmem:[#allocation13 + $0x4] sm:$0xf]
    %v2350 = vld [vmem:[#allocation13 + $0x8] sm:$0xf]
    %v2351 = vld [vmem:[#allocation13 + $0xc] sm:$0xf]
    %v2352 = vld [vmem:[#allocation13 + $0x10] sm:$0xf]
    %v2353 = vld [vmem:[#allocation13 + $0x14] sm:$0xf]
    %v2354 = vld [vmem:[#allocation13 + $0x18] sm:$0xf]
    %v2355 = vld [vmem:[#allocation13 + $0x1c] sm:$0xf]
    %v2356 = vld [vmem:[#allocation13 + $0x20] sm:$0xf]
    %v2357 = vld [vmem:[#allocation13 + $0x24] sm:$0xf]
    %v2358 = vld [vmem:[#allocation13 + $0x28] sm:$0xf]
    %v2359 = vld [vmem:[#allocation13 + $0x2c] sm:$0xf]
    %v2360 = vld [vmem:[#allocation13 + $0x30] sm:$0xf]
    %v2361 = vld [vmem:[#allocation13 + $0x34] sm:$0xf]
    %v2362 = vld [vmem:[#allocation13 + $0x38] sm:$0xf]
    %v2363 = vld [vmem:[#allocation13 + $0x3c] sm:$0xf]
    %v2364 = vld [vmem:[#allocation13 + $0x40] sm:$0xf]
    %v2365 = vld [vmem:[#allocation13 + $0x44] sm:$0xf]
    %v2366 = vld [vmem:[#allocation13 + $0x48] sm:$0xf]
    %v2367 = vld [vmem:[#allocation13 + $0x4c] sm:$0xf]
    %v2368 = vld [vmem:[#allocation13 + $0x50] sm:$0xf]
    %v2369 = vld [vmem:[#allocation13 + $0x54] sm:$0xf]
    %v2370 = vld [vmem:[#allocation13 + $0x58] sm:$0xf]
    %v2371 = vld [vmem:[#allocation13 + $0x5c] sm:$0xf]
    %v2372 = vld [vmem:[#allocation13 + $0x60] sm:$0xf]
    %v2373 = vld [vmem:[#allocation13 + $0x64] sm:$0xf]
    %v2374 = vld [vmem:[#allocation13 + $0x68] sm:$0xf]
    %v2375 = vld [vmem:[#allocation13 + $0x6c] sm:$0xf]
    %v2376 = vld [vmem:[#allocation13 + $0x70] sm:$0xf]
    %v2377 = vld [vmem:[#allocation13 + $0x74] sm:$0xf]
    %v2378 = vld [vmem:[#allocation13 + $0x78] sm:$0xf]
    %v2379 = vld [vmem:[#allocation13 + $0x7c] sm:$0xf]
    %v2380 = vld [vmem:[#allocation13 + $0x80] sm:$0xf]
    %v2381 = vld [vmem:[#allocation13 + $0x84] sm:$0xf]
    %v2382 = vld [vmem:[#allocation13 + $0x88] sm:$0xf]
    %v2383 = vld [vmem:[#allocation13 + $0x8c] sm:$0xf]
    %v2384 = vld [vmem:[#allocation13 + $0x90] sm:$0xf]
    %v2385 = vld [vmem:[#allocation13 + $0x94] sm:$0xf]
    %v2386 = vld [vmem:[#allocation13 + $0x98] sm:$0xf]
    %v2387 = vld [vmem:[#allocation13 + $0x9c] sm:$0xf]
    %v2388 = vld [vmem:[#allocation13 + $0xa0] sm:$0xf]
    %v2389 = vld [vmem:[#allocation13 + $0xa4] sm:$0xf]
    %v2390 = vld [vmem:[#allocation13 + $0xa8] sm:$0xf]
    %v2391 = vld [vmem:[#allocation13 + $0xac] sm:$0xf]
    %v2392 = vld [vmem:[#allocation13 + $0xb0] sm:$0xf]
    %v2393 = vld [vmem:[#allocation13 + $0xb4] sm:$0xf]
    %v2394 = vld [vmem:[#allocation13 + $0xb8] sm:$0xf]
    %v2395 = vld [vmem:[#allocation13 + $0xbc] sm:$0xf]
    %v2396 = vld [vmem:[#allocation13 + $0xc0] sm:$0xf]
    %v2397 = vld [vmem:[#allocation13 + $0xc4] sm:$0xf]
    %v2398 = vld [vmem:[#allocation13 + $0xc8] sm:$0xf]
    %v2399 = vld [vmem:[#allocation13 + $0xcc] sm:$0xf]
    %v2400 = vld [vmem:[#allocation13 + $0xd0] sm:$0xf]
    %v2401 = vld [vmem:[#allocation13 + $0xd4] sm:$0xf]
    %v2402 = vld [vmem:[#allocation13 + $0xd8] sm:$0xf]
    %v2403 = vld [vmem:[#allocation13 + $0xdc] sm:$0xf]
    %v2404 = vld [vmem:[#allocation13 + $0xe0] sm:$0xf]
    %v2405 = vld [vmem:[#allocation13 + $0xe4] sm:$0xf]
    %v2406 = vld [vmem:[#allocation13 + $0xe8] sm:$0xf]
    %v2407 = vld [vmem:[#allocation13 + $0xec] sm:$0xf]
    %v2408 = vld [vmem:[#allocation13 + $0xf0] sm:$0xf]
    %v2409 = vld [vmem:[#allocation13 + $0xf4] sm:$0xf]
    %v2410 = vld [vmem:[#allocation13 + $0xf8] sm:$0xf]
    %v2411 = vld [vmem:[#allocation13 + $0xfc] sm:$0xf]
    %v2412 = vld [vmem:[#allocation13 + $0x100] sm:$0xf]
    %v2413 = vld [vmem:[#allocation13 + $0x104] sm:$0xf]
    %v2414 = vld [vmem:[#allocation13 + $0x108] sm:$0xf]
    %v2415 = vld [vmem:[#allocation13 + $0x10c] sm:$0xf]
    %v2416 = vld [vmem:[#allocation13 + $0x110] sm:$0xf]
    %v2417 = vld [vmem:[#allocation13 + $0x114] sm:$0xf]
    %v2418 = vld [vmem:[#allocation13 + $0x118] sm:$0xf]
    %v2419 = vld [vmem:[#allocation13 + $0x11c] sm:$0xf]
    %v2420 = vld [vmem:[#allocation13 + $0x120] sm:$0xf]
    %v2421 = vld [vmem:[#allocation13 + $0x124] sm:$0xf]
    %v2422 = vld [vmem:[#allocation13 + $0x128] sm:$0xf]
    %v2423 = vld [vmem:[#allocation13 + $0x12c] sm:$0xf]
    %v2424 = vld [vmem:[#allocation13 + $0x130] sm:$0xf]
    %v2425 = vld [vmem:[#allocation13 + $0x134] sm:$0xf]
    %v2426 = vld [vmem:[#allocation13 + $0x138] sm:$0xf]
    %v2427 = vld [vmem:[#allocation13 + $0x13c] sm:$0xf]
    %v2428 = vld [vmem:[#allocation13 + $0x140] sm:$0xf]
    %v2429 = vld [vmem:[#allocation13 + $0x144] sm:$0xf]
    %v2430 = vld [vmem:[#allocation13 + $0x148] sm:$0xf]
    %v2431 = vld [vmem:[#allocation13 + $0x14c] sm:$0xf]
    %v2432 = vld [vmem:[#allocation13 + $0x150] sm:$0xf]
    %v2433 = vld [vmem:[#allocation13 + $0x154] sm:$0xf]
    %v2434 = vld [vmem:[#allocation13 + $0x158] sm:$0xf]
    %v2435 = vld [vmem:[#allocation13 + $0x15c] sm:$0xf]
    %v2436 = vld [vmem:[#allocation13 + $0x160] sm:$0xf]
    %v2437 = vld [vmem:[#allocation13 + $0x164] sm:$0xf]
    %v2438 = vld [vmem:[#allocation13 + $0x168] sm:$0xf]
    %v2439 = vld [vmem:[#allocation13 + $0x16c] sm:$0xf]
    %v2440 = vld [vmem:[#allocation13 + $0x170] sm:$0xf]
    %v2441 = vld [vmem:[#allocation13 + $0x174] sm:$0xf]
    %v2442 = vld [vmem:[#allocation13 + $0x178] sm:$0xf]
    %v2443 = vld [vmem:[#allocation13 + $0x17c] sm:$0xf]
    %v2444 = vld [vmem:[#allocation13 + $0x180] sm:$0xf]
    %v2445 = vld [vmem:[#allocation13 + $0x184] sm:$0xf]
    %v2446 = vld [vmem:[#allocation13 + $0x188] sm:$0xf]
    %v2447 = vld [vmem:[#allocation13 + $0x18c] sm:$0xf]
    %v2448 = vld [vmem:[#allocation13 + $0x190] sm:$0xf]
    %v2449 = vld [vmem:[#allocation13 + $0x194] sm:$0xf]
    %v2450 = vld [vmem:[#allocation13 + $0x198] sm:$0xf]
    %v2451 = vld [vmem:[#allocation13 + $0x19c] sm:$0xf]
    %v2452 = vld [vmem:[#allocation13 + $0x1a0] sm:$0xf]
    %v2453 = vld [vmem:[#allocation13 + $0x1a4] sm:$0xf]
    %v2454 = vld [vmem:[#allocation13 + $0x1a8] sm:$0xf]
    %v2455 = vld [vmem:[#allocation13 + $0x1ac] sm:$0xf]
    %v2456 = vld [vmem:[#allocation13 + $0x1b0] sm:$0xf]
    %v2457 = vld [vmem:[#allocation13 + $0x1b4] sm:$0xf]
    %v2458 = vld [vmem:[#allocation13 + $0x1b8] sm:$0xf]
    %v2459 = vld [vmem:[#allocation13 + $0x1bc] sm:$0xf]
    %v2460 = vld [vmem:[#allocation13 + $0x1c0] sm:$0xf]
    %v2461 = vld [vmem:[#allocation13 + $0x1c4] sm:$0xf]
    %v2462 = vld [vmem:[#allocation13 + $0x1c8] sm:$0xf]
    %v2463 = vld [vmem:[#allocation13 + $0x1cc] sm:$0xf]
    %v2464 = vld [vmem:[#allocation13 + $0x1d0] sm:$0xf]
    %v2465 = vld [vmem:[#allocation13 + $0x1d4] sm:$0xf]
    %v2466 = vld [vmem:[#allocation13 + $0x1d8] sm:$0xf]
    %v2467 = vld [vmem:[#allocation13 + $0x1dc] sm:$0xf]
    %v2468 = vld [vmem:[#allocation13 + $0x1e0] sm:$0xf]
    %v2469 = vld [vmem:[#allocation13 + $0x1e4] sm:$0xf]
    %v2470 = vld [vmem:[#allocation13 + $0x1e8] sm:$0xf]
    %v2471 = vld [vmem:[#allocation13 + $0x1ec] sm:$0xf]
    %v2472 = vld [vmem:[#allocation13 + $0x1f0] sm:$0xf]
    %v2473 = vld [vmem:[#allocation13 + $0x1f4] sm:$0xf]
    %v2474 = vld [vmem:[#allocation13 + $0x1f8] sm:$0xf]
    %v2475 = vld [vmem:[#allocation13 + $0x1fc] sm:$0xf]
    %v2604 = vunpack.c.l.b16 %v2348
    %v2605 = vunpack.c.l.b16 %v2349
    %v2606 = vunpack.c.l.b16 %v2350
    %v2607 = vunpack.c.l.b16 %v2351
    %v2608 = vunpack.c.l.b16 %v2352
    %v2609 = vunpack.c.l.b16 %v2353
    %v2610 = vunpack.c.l.b16 %v2354
    %v2611 = vunpack.c.l.b16 %v2355
    %v2612 = vunpack.c.l.b16 %v2356
    %v2613 = vunpack.c.l.b16 %v2357
    %v2614 = vunpack.c.l.b16 %v2358
    %v2615 = vunpack.c.l.b16 %v2359
    %v2616 = vunpack.c.l.b16 %v2360
    %v2617 = vunpack.c.l.b16 %v2361
    %v2618 = vunpack.c.l.b16 %v2362
    %v2619 = vunpack.c.l.b16 %v2363
    %v2620 = vunpack.c.l.b16 %v2364
    %v2621 = vunpack.c.l.b16 %v2365
    %v2622 = vunpack.c.l.b16 %v2366
    %v2623 = vunpack.c.l.b16 %v2367
    %v2624 = vunpack.c.l.b16 %v2368
    %v2625 = vunpack.c.l.b16 %v2369
    %v2626 = vunpack.c.l.b16 %v2370
    %v2627 = vunpack.c.l.b16 %v2371
    %v2628 = vunpack.c.l.b16 %v2372
    %v2629 = vunpack.c.l.b16 %v2373
    %v2630 = vunpack.c.l.b16 %v2374
    %v2631 = vunpack.c.l.b16 %v2375
    %v2632 = vunpack.c.l.b16 %v2376
    %v2633 = vunpack.c.l.b16 %v2377
    %v2634 = vunpack.c.l.b16 %v2378
    %v2635 = vunpack.c.l.b16 %v2379
    %v2636 = vunpack.c.l.b16 %v2380
    %v2637 = vunpack.c.l.b16 %v2381
    %v2638 = vunpack.c.l.b16 %v2382
    %v2639 = vunpack.c.l.b16 %v2383
    %v2640 = vunpack.c.l.b16 %v2384
    %v2641 = vunpack.c.l.b16 %v2385
    %v2642 = vunpack.c.l.b16 %v2386
    %v2643 = vunpack.c.l.b16 %v2387
    %v2644 = vunpack.c.l.b16 %v2388
    %v2645 = vunpack.c.l.b16 %v2389
    %v2646 = vunpack.c.l.b16 %v2390
    %v2647 = vunpack.c.l.b16 %v2391
    %v2648 = vunpack.c.l.b16 %v2392
    %v2649 = vunpack.c.l.b16 %v2393
    %v2650 = vunpack.c.l.b16 %v2394
    %v2651 = vunpack.c.l.b16 %v2395
    %v2652 = vunpack.c.l.b16 %v2396
    %v2653 = vunpack.c.l.b16 %v2397
    %v2654 = vunpack.c.l.b16 %v2398
    %v2655 = vunpack.c.l.b16 %v2399
    %v2656 = vunpack.c.l.b16 %v2400
    %v2657 = vunpack.c.l.b16 %v2401
    %v2658 = vunpack.c.l.b16 %v2402
    %v2659 = vunpack.c.l.b16 %v2403
    %v2660 = vunpack.c.l.b16 %v2404
    %v2661 = vunpack.c.l.b16 %v2405
    %v2662 = vunpack.c.l.b16 %v2406
    %v2663 = vunpack.c.l.b16 %v2407
    %v2664 = vunpack.c.l.b16 %v2408
    %v2665 = vunpack.c.l.b16 %v2409
    %v2666 = vunpack.c.l.b16 %v2410
    %v2667 = vunpack.c.l.b16 %v2411
    %v2668 = vunpack.c.l.b16 %v2412
    %v2669 = vunpack.c.l.b16 %v2413
    %v2670 = vunpack.c.l.b16 %v2414
    %v2671 = vunpack.c.l.b16 %v2415
    %v2672 = vunpack.c.l.b16 %v2416
    %v2673 = vunpack.c.l.b16 %v2417
    %v2674 = vunpack.c.l.b16 %v2418
    %v2675 = vunpack.c.l.b16 %v2419
    %v2676 = vunpack.c.l.b16 %v2420
    %v2677 = vunpack.c.l.b16 %v2421
    %v2678 = vunpack.c.l.b16 %v2422
    %v2679 = vunpack.c.l.b16 %v2423
    %v2680 = vunpack.c.l.b16 %v2424
    %v2681 = vunpack.c.l.b16 %v2425
    %v2682 = vunpack.c.l.b16 %v2426
    %v2683 = vunpack.c.l.b16 %v2427
    %v2684 = vunpack.c.l.b16 %v2428
    %v2685 = vunpack.c.l.b16 %v2429
    %v2686 = vunpack.c.l.b16 %v2430
    %v2687 = vunpack.c.l.b16 %v2431
    %v2688 = vunpack.c.l.b16 %v2432
    %v2689 = vunpack.c.l.b16 %v2433
    %v2690 = vunpack.c.l.b16 %v2434
    %v2691 = vunpack.c.l.b16 %v2435
    %v2692 = vunpack.c.l.b16 %v2436
    %v2693 = vunpack.c.l.b16 %v2437
    %v2694 = vunpack.c.l.b16 %v2438
    %v2695 = vunpack.c.l.b16 %v2439
    %v2696 = vunpack.c.l.b16 %v2440
    %v2697 = vunpack.c.l.b16 %v2441
    %v2698 = vunpack.c.l.b16 %v2442
    %v2699 = vunpack.c.l.b16 %v2443
    %v2700 = vunpack.c.l.b16 %v2444
    %v2701 = vunpack.c.l.b16 %v2445
    %v2702 = vunpack.c.l.b16 %v2446
    %v2703 = vunpack.c.l.b16 %v2447
    %v2704 = vunpack.c.l.b16 %v2448
    %v2705 = vunpack.c.l.b16 %v2449
    %v2706 = vunpack.c.l.b16 %v2450
    %v2707 = vunpack.c.l.b16 %v2451
    %v2708 = vunpack.c.l.b16 %v2452
    %v2709 = vunpack.c.l.b16 %v2453
    %v2710 = vunpack.c.l.b16 %v2454
    %v2711 = vunpack.c.l.b16 %v2455
    %v2712 = vunpack.c.l.b16 %v2456
    %v2713 = vunpack.c.l.b16 %v2457
    %v2714 = vunpack.c.l.b16 %v2458
    %v2715 = vunpack.c.l.b16 %v2459
    %v2716 = vunpack.c.l.b16 %v2460
    %v2717 = vunpack.c.l.b16 %v2461
    %v2718 = vunpack.c.l.b16 %v2462
    %v2719 = vunpack.c.l.b16 %v2463
    %v2720 = vunpack.c.l.b16 %v2464
    %v2721 = vunpack.c.l.b16 %v2465
    %v2722 = vunpack.c.l.b16 %v2466
    %v2723 = vunpack.c.l.b16 %v2467
    %v2724 = vunpack.c.l.b16 %v2468
    %v2725 = vunpack.c.l.b16 %v2469
    %v2726 = vunpack.c.l.b16 %v2470
    %v2727 = vunpack.c.l.b16 %v2471
    %v2728 = vunpack.c.l.b16 %v2472
    %v2729 = vunpack.c.l.b16 %v2473
    %v2730 = vunpack.c.l.b16 %v2474
    %v2731 = vunpack.c.l.b16 %v2475
    %v2732 = vpack.c.b16 %v2605, %v2604
    %v2733 = vpack.c.b16 %v2607, %v2606
    %v2734 = vpack.c.b16 %v2609, %v2608
    %v2735 = vpack.c.b16 %v2611, %v2610
    %v2736 = vpack.c.b16 %v2613, %v2612
    %v2737 = vpack.c.b16 %v2615, %v2614
    %v2738 = vpack.c.b16 %v2617, %v2616
    %v2739 = vpack.c.b16 %v2619, %v2618
    %v2740 = vpack.c.b16 %v2621, %v2620
    %v2741 = vpack.c.b16 %v2623, %v2622
    %v2742 = vpack.c.b16 %v2625, %v2624
    %v2743 = vpack.c.b16 %v2627, %v2626
    %v2744 = vpack.c.b16 %v2629, %v2628
    %v2745 = vpack.c.b16 %v2631, %v2630
    %v2746 = vpack.c.b16 %v2633, %v2632
    %v2747 = vpack.c.b16 %v2635, %v2634
    %v2748 = vpack.c.b16 %v2637, %v2636
    %v2749 = vpack.c.b16 %v2639, %v2638
    %v2750 = vpack.c.b16 %v2641, %v2640
    %v2751 = vpack.c.b16 %v2643, %v2642
    %v2752 = vpack.c.b16 %v2645, %v2644
    %v2753 = vpack.c.b16 %v2647, %v2646
    %v2754 = vpack.c.b16 %v2649, %v2648
    %v2755 = vpack.c.b16 %v2651, %v2650
    %v2756 = vpack.c.b16 %v2653, %v2652
    %v2757 = vpack.c.b16 %v2655, %v2654
    %v2758 = vpack.c.b16 %v2657, %v2656
    %v2759 = vpack.c.b16 %v2659, %v2658
    %v2760 = vpack.c.b16 %v2661, %v2660
    %v2761 = vpack.c.b16 %v2663, %v2662
    %v2762 = vpack.c.b16 %v2665, %v2664
    %v2763 = vpack.c.b16 %v2667, %v2666
    %v2764 = vpack.c.b16 %v2669, %v2668
    %v2765 = vpack.c.b16 %v2671, %v2670
    %v2766 = vpack.c.b16 %v2673, %v2672
    %v2767 = vpack.c.b16 %v2675, %v2674
    %v2768 = vpack.c.b16 %v2677, %v2676
    %v2769 = vpack.c.b16 %v2679, %v2678
    %v2770 = vpack.c.b16 %v2681, %v2680
    %v2771 = vpack.c.b16 %v2683, %v2682
    %v2772 = vpack.c.b16 %v2685, %v2684
    %v2773 = vpack.c.b16 %v2687, %v2686
    %v2774 = vpack.c.b16 %v2689, %v2688
    %v2775 = vpack.c.b16 %v2691, %v2690
    %v2776 = vpack.c.b16 %v2693, %v2692
    %v2777 = vpack.c.b16 %v2695, %v2694
    %v2778 = vpack.c.b16 %v2697, %v2696
    %v2779 = vpack.c.b16 %v2699, %v2698
    %v2780 = vpack.c.b16 %v2701, %v2700
    %v2781 = vpack.c.b16 %v2703, %v2702
    %v2782 = vpack.c.b16 %v2705, %v2704
    %v2783 = vpack.c.b16 %v2707, %v2706
    %v2784 = vpack.c.b16 %v2709, %v2708
    %v2785 = vpack.c.b16 %v2711, %v2710
    %v2786 = vpack.c.b16 %v2713, %v2712
    %v2787 = vpack.c.b16 %v2715, %v2714
    %v2788 = vpack.c.b16 %v2717, %v2716
    %v2789 = vpack.c.b16 %v2719, %v2718
    %v2790 = vpack.c.b16 %v2721, %v2720
    %v2791 = vpack.c.b16 %v2723, %v2722
    %v2792 = vpack.c.b16 %v2725, %v2724
    %v2793 = vpack.c.b16 %v2727, %v2726
    %v2794 = vpack.c.b16 %v2729, %v2728
    %v2795 = vpack.c.b16 %v2731, %v2730
    %2860 = vmatprep.subr.bf16.mxu0 0
    %2861 = vmatpush1.bf16.msra.mxu0 %v2732
    %2862 = vmatprep.subr.bf16.mxu0 0
    %2863 = vmatpush1.bf16.msra.mxu0 %v2733
    %2864 = vmatprep.subr.bf16.mxu0 0
    %2865 = vmatpush1.bf16.msra.mxu0 %v2734
    %2866 = vmatprep.subr.bf16.mxu0 0
    %2867 = vmatpush1.bf16.msra.mxu0 %v2735
    %2868 = vmatprep.subr.bf16.mxu0 0
    %2869 = vmatpush1.bf16.msra.mxu0 %v2736
    %2870 = vmatprep.subr.bf16.mxu0 0
    %2871 = vmatpush1.bf16.msra.mxu0 %v2737
    %2872 = vmatprep.subr.bf16.mxu0 0
    %2873 = vmatpush1.bf16.msra.mxu0 %v2738
    %2874 = vmatprep.subr.bf16.mxu0 0
    %2875 = vmatpush1.bf16.msra.mxu0 %v2739
    %2876 = vmatprep.subr.bf16.mxu0 0
    %2877 = vmatpush1.bf16.msra.mxu0 %v2740
    %2878 = vmatprep.subr.bf16.mxu0 0
    %2879 = vmatpush1.bf16.msra.mxu0 %v2741
    %2880 = vmatprep.subr.bf16.mxu0 0
    %2881 = vmatpush1.bf16.msra.mxu0 %v2742
    %2882 = vmatprep.subr.bf16.mxu0 0
    %2883 = vmatpush1.bf16.msra.mxu0 %v2743
    %2884 = vmatprep.subr.bf16.mxu0 0
    %2885 = vmatpush1.bf16.msra.mxu0 %v2744
    %2886 = vmatprep.subr.bf16.mxu0 0
    %2887 = vmatpush1.bf16.msra.mxu0 %v2745
    %2888 = vmatprep.subr.bf16.mxu0 0
    %2889 = vmatpush1.bf16.msra.mxu0 %v2746
    %2890 = vmatprep.subr.bf16.mxu0 0
    %2891 = vmatpush1.bf16.msra.mxu0 %v2747
    %2892 = vmatprep.mubr.bf16.mxu0 %v2341
    %2893 = vmatmul.mubr.bf16.gmra.mrb[0].mxu0 %v2340
    %v2894 = vpop.f32.mrb[0].mxu0
    %v2895 = vadd.f32 0.0, %v2894
    %v2896 = vpop.f32.mrb[0].mxu0
    %v2897 = vpop.f32.mrb[0].mxu0
    %v2898 = vadd.f32 0.0, %v2897
    %v2899 = vpop.f32.mrb[0].mxu0
    %2900 = vdwg.mxu0
    %2901 = vmatprep.subr.bf16.mxu0 0
    %2902 = vmatpush1.bf16.msra.mxu0 %v2748
    %2903 = vmatprep.subr.bf16.mxu0 0
    %2904 = vmatpush1.bf16.msra.mxu0 %v2749
    %2905 = vmatprep.subr.bf16.mxu0 0
    %2906 = vmatpush1.bf16.msra.mxu0 %v2750
    %2907 = vmatprep.subr.bf16.mxu0 0
    %2908 = vmatpush1.bf16.msra.mxu0 %v2751
    %2909 = vmatprep.subr.bf16.mxu0 0
    %2910 = vmatpush1.bf16.msra.mxu0 %v2752
    %2911 = vmatprep.subr.bf16.mxu0 0
    %2912 = vmatpush1.bf16.msra.mxu0 %v2753
    %2913 = vmatprep.subr.bf16.mxu0 0
    %2914 = vmatpush1.bf16.msra.mxu0 %v2754
    %2915 = vmatprep.subr.bf16.mxu0 0
    %2916 = vmatpush1.bf16.msra.mxu0 %v2755
    %2917 = vmatprep.subr.bf16.mxu0 0
    %2918 = vmatpush1.bf16.msra.mxu0 %v2756
    %2919 = vmatprep.subr.bf16.mxu0 0
    %2920 = vmatpush1.bf16.msra.mxu0 %v2757
    %2921 = vmatprep.subr.bf16.mxu0 0
    %2922 = vmatpush1.bf16.msra.mxu0 %v2758
    %2923 = vmatprep.subr.bf16.mxu0 0
    %2924 = vmatpush1.bf16.msra.mxu0 %v2759
    %2925 = vmatprep.subr.bf16.mxu0 0
    %2926 = vmatpush1.bf16.msra.mxu0 %v2760
    %2927 = vmatprep.subr.bf16.mxu0 0
    %2928 = vmatpush1.bf16.msra.mxu0 %v2761
    %2929 = vmatprep.subr.bf16.mxu0 0
    %2930 = vmatpush1.bf16.msra.mxu0 %v2762
    %2931 = vmatprep.subr.bf16.mxu0 0
    %2932 = vmatpush1.bf16.msra.mxu0 %v2763
    %2933 = vmatprep.mubr.bf16.mxu0 %v2343
    %2934 = vmatmul.mubr.bf16.gmra.mrb[0].mxu0 %v2342
    %v2935 = vpop.f32.mrb[0].mxu0
    %v2936 = vadd.f32 %v2895, %v2935
    %v2937 = vpop.f32.mrb[0].mxu0
    %v2938 = vpop.f32.mrb[0].mxu0
    %v2939 = vadd.f32 %v2898, %v2938
    %v2940 = vpop.f32.mrb[0].mxu0
    %2941 = vdwg.mxu0
    %2942 = vmatprep.subr.bf16.mxu0 0
    %2943 = vmatpush1.bf16.msra.mxu0 %v2764
    %2944 = vmatprep.subr.bf16.mxu0 0
    %2945 = vmatpush1.bf16.msra.mxu0 %v2765
    %2946 = vmatprep.subr.bf16.mxu0 0
    %2947 = vmatpush1.bf16.msra.mxu0 %v2766
    %2948 = vmatprep.subr.bf16.mxu0 0
    %2949 = vmatpush1.bf16.msra.mxu0 %v2767
    %2950 = vmatprep.subr.bf16.mxu0 0
    %2951 = vmatpush1.bf16.msra.mxu0 %v2768
    %2952 = vmatprep.subr.bf16.mxu0 0
    %2953 = vmatpush1.bf16.msra.mxu0 %v2769
    %2954 = vmatprep.subr.bf16.mxu0 0
    %2955 = vmatpush1.bf16.msra.mxu0 %v2770
    %2956 = vmatprep.subr.bf16.mxu0 0
    %2957 = vmatpush1.bf16.msra.mxu0 %v2771
    %2958 = vmatprep.subr.bf16.mxu0 0
    %2959 = vmatpush1.bf16.msra.mxu0 %v2772
    %2960 = vmatprep.subr.bf16.mxu0 0
    %2961 = vmatpush1.bf16.msra.mxu0 %v2773
    %2962 = vmatprep.subr.bf16.mxu0 0
    %2963 = vmatpush1.bf16.msra.mxu0 %v2774
    %2964 = vmatprep.subr.bf16.mxu0 0
    %2965 = vmatpush1.bf16.msra.mxu0 %v2775
    %2966 = vmatprep.subr.bf16.mxu0 0
    %2967 = vmatpush1.bf16.msra.mxu0 %v2776
    %2968 = vmatprep.subr.bf16.mxu0 0
    %2969 = vmatpush1.bf16.msra.mxu0 %v2777
    %2970 = vmatprep.subr.bf16.mxu0 0
    %2971 = vmatpush1.bf16.msra.mxu0 %v2778
    %2972 = vmatprep.subr.bf16.mxu0 0
    %2973 = vmatpush1.bf16.msra.mxu0 %v2779
    %2974 = vmatprep.mubr.bf16.mxu0 %v2345
    %2975 = vmatmul.mubr.bf16.gmra.mrb[0].mxu0 %v2344
    %v2976 = vpop.f32.mrb[0].mxu0
    %v2977 = vadd.f32 %v2936, %v2976
    %v2978 = vpop.f32.mrb[0].mxu0
    %v2979 = vpop.f32.mrb[0].mxu0
    %v2980 = vadd.f32 %v2939, %v2979
    %v2981 = vpop.f32.mrb[0].mxu0
    %2982 = vdwg.mxu0
    %2983 = vmatprep.subr.bf16.mxu0 0
    %2984 = vmatpush1.bf16.msra.mxu0 %v2780
    %2985 = vmatprep.subr.bf16.mxu0 0
    %2986 = vmatpush1.bf16.msra.mxu0 %v2781
    %2987 = vmatprep.subr.bf16.mxu0 0
    %2988 = vmatpush1.bf16.msra.mxu0 %v2782
    %2989 = vmatprep.subr.bf16.mxu0 0
    %2990 = vmatpush1.bf16.msra.mxu0 %v2783
    %2991 = vmatprep.subr.bf16.mxu0 0
    %2992 = vmatpush1.bf16.msra.mxu0 %v2784
    %2993 = vmatprep.subr.bf16.mxu0 0
    %2994 = vmatpush1.bf16.msra.mxu0 %v2785
    %2995 = vmatprep.subr.bf16.mxu0 0
    %2996 = vmatpush1.bf16.msra.mxu0 %v2786
    %2997 = vmatprep.subr.bf16.mxu0 0
    %2998 = vmatpush1.bf16.msra.mxu0 %v2787
    %2999 = vmatprep.subr.bf16.mxu0 0
    %3000 = vmatpush1.bf16.msra.mxu0 %v2788
    %3001 = vmatprep.subr.bf16.mxu0 0
    %3002 = vmatpush1.bf16.msra.mxu0 %v2789
    %3003 = vmatprep.subr.bf16.mxu0 0
    %3004 = vmatpush1.bf16.msra.mxu0 %v2790
    %3005 = vmatprep.subr.bf16.mxu0 0
    %3006 = vmatpush1.bf16.msra.mxu0 %v2791
    %3007 = vmatprep.subr.bf16.mxu0 0
    %3008 = vmatpush1.bf16.msra.mxu0 %v2792
    %3009 = vmatprep.subr.bf16.mxu0 0
    %3010 = vmatpush1.bf16.msra.mxu0 %v2793
    %3011 = vmatprep.subr.bf16.mxu0 0
    %3012 = vmatpush1.bf16.msra.mxu0 %v2794
    %3013 = vmatprep.subr.bf16.mxu0 0
    %3014 = vmatpush1.bf16.msra.mxu0 %v2795
    %3015 = vmatprep.mubr.bf16.mxu0 %v2347
    %3016 = vmatmul.mubr.bf16.gmra.mrb[0].mxu0 %v2346
    %v3017 = vpop.f32.mrb[0].mxu0
    %v3018 = vadd.f32 %v2977, %v3017
    %v3019 = vpop.f32.mrb[0].mxu0
    %v3020 = vpop.f32.mrb[0].mxu0
    %v3021 = vadd.f32 %v2980, %v3020
    %v3022 = vpop.f32.mrb[0].mxu0
    %3023 = vdwg.mxu0
    %v3024 = vrcp.pop %v1770
    %v3025 = vrcp.pop %v1773
    %v3026 = vmul.f32 %v3018, %v3024
    %v3027 = vmul.f32 %v3021, %v3025
    %v3028 = vpack.c.bf16 %v3027, %v3026
    %v3029 = vld [vmem:[#allocation14] sm:$0xf]
    %v3030 = vld [vmem:[#allocation14 + $0x4] sm:$0xf]
    %v3031 = vld [vmem:[#allocation14 + $0x8] sm:$0xf]
    %v3032 = vld [vmem:[#allocation14 + $0xc] sm:$0xf]
    %v3033 = vld [vmem:[#allocation14 + $0x10] sm:$0xf]
    %v3034 = vld [vmem:[#allocation14 + $0x14] sm:$0xf]
    %v3035 = vld [vmem:[#allocation14 + $0x18] sm:$0xf]
    %v3036 = vld [vmem:[#allocation14 + $0x1c] sm:$0xf]
    %v3037 = vld [vmem:[#allocation14 + $0x20] sm:$0xf]
    %v3038 = vld [vmem:[#allocation14 + $0x24] sm:$0xf]
    %v3039 = vld [vmem:[#allocation14 + $0x28] sm:$0xf]
    %v3040 = vld [vmem:[#allocation14 + $0x2c] sm:$0xf]
    %v3041 = vld [vmem:[#allocation14 + $0x30] sm:$0xf]
    %v3042 = vld [vmem:[#allocation14 + $0x34] sm:$0xf]
    %v3043 = vld [vmem:[#allocation14 + $0x38] sm:$0xf]
    %v3044 = vld [vmem:[#allocation14 + $0x3c] sm:$0xf]
    %v3061 = vunpack.c.l.b16 %v3029
    %v3062 = vunpack.c.l.b16 %v3030
    %v3063 = vunpack.c.l.b16 %v3031
    %v3064 = vunpack.c.l.b16 %v3032
    %v3065 = vunpack.c.l.b16 %v3033
    %v3066 = vunpack.c.l.b16 %v3034
    %v3067 = vunpack.c.l.b16 %v3035
    %v3068 = vunpack.c.l.b16 %v3036
    %v3069 = vunpack.c.l.b16 %v3037
    %v3070 = vunpack.c.l.b16 %v3038
    %v3071 = vunpack.c.l.b16 %v3039
    %v3072 = vunpack.c.l.b16 %v3040
    %v3073 = vunpack.c.l.b16 %v3041
    %v3074 = vunpack.c.l.b16 %v3042
    %v3075 = vunpack.c.l.b16 %v3043
    %v3076 = vunpack.c.l.b16 %v3044
    %v3077 = vpack.c.b16 %v3062, %v3061
    %v3078 = vpack.c.b16 %v3064, %v3063
    %v3079 = vpack.c.b16 %v3066, %v3065
    %v3080 = vpack.c.b16 %v3068, %v3067
    %v3081 = vpack.c.b16 %v3070, %v3069
    %v3082 = vpack.c.b16 %v3072, %v3071
    %v3083 = vpack.c.b16 %v3074, %v3073
    %v3084 = vpack.c.b16 %v3076, %v3075
    %3093 = vmatprep.subr.bf16.mxu0 0
    %3094 = vmatpush1.bf16.msra.mxu0 %v3077
    %3095 = vmatprep.subr.bf16.mxu0 0
    %3096 = vmatpush1.bf16.msra.mxu0 %v3078
    %3097 = vmatprep.subr.bf16.mxu0 0
    %3098 = vmatpush1.bf16.msra.mxu0 %v3079
    %3099 = vmatprep.subr.bf16.mxu0 0
    %3100 = vmatpush1.bf16.msra.mxu0 %v3080
    %3101 = vmatprep.subr.bf16.mxu0 0
    %3102 = vmatpush1.bf16.msra.mxu0 %v3081
    %3103 = vmatprep.subr.bf16.mxu0 0
    %3104 = vmatpush1.bf16.msra.mxu0 %v3082
    %3105 = vmatprep.subr.bf16.mxu0 0
    %3106 = vmatpush1.bf16.msra.mxu0 %v3083
    %3107 = vmatprep.subr.bf16.mxu0 0
    %3108 = vmatpush1.bf16.msra.mxu0 %v3084
    %3109 = vmatprep.subr.bf16.mxu0 0
    %3110 = vmatpush1.bf16.msra.mxu0 0
    %3111 = vmatprep.subr.bf16.mxu0 0
    %3112 = vmatpush1.bf16.msra.mxu0 0
    %3113 = vmatprep.subr.bf16.mxu0 0
    %3114 = vmatpush1.bf16.msra.mxu0 0
    %3115 = vmatprep.subr.bf16.mxu0 0
    %3116 = vmatpush1.bf16.msra.mxu0 0
    %3117 = vmatprep.subr.bf16.mxu0 0
    %3118 = vmatpush1.bf16.msra.mxu0 0
    %3119 = vmatprep.subr.bf16.mxu0 0
    %3120 = vmatpush1.bf16.msra.mxu0 0
    %3121 = vmatprep.subr.bf16.mxu0 0
    %3122 = vmatpush1.bf16.msra.mxu0 0
    %3123 = vmatprep.subr.bf16.mxu0 0
    %3124 = vmatpush1.bf16.msra.mxu0 0
    %3125 = vmatprep.mubr.bf16.mxu0 0
    %3126 = vmatmul.mubr.bf16.gmra.mrb[0].mxu0 %v3028
    %v3127 = vpop.f32.mrb[0].mxu0
    %v3128 = vadd.f32 0.0, %v3127
    %v3129 = vpop.f32.mrb[0].mxu0
    %v3130 = vpop.f32.mrb[0].mxu0
    %v3131 = vadd.f32 0.0, %v3130
    %v3132 = vpop.f32.mrb[0].mxu0
    %3133 = vdwg.mxu0
    %3134 = vst [vmem:[#allocation16] sm:$0xff] %v3128
    %3135 = vst [vmem:[#allocation16 + $0x8] sm:$0xff] %v3131
    // Predicated region
    $region66: #{tpu_custom_call.1} parent=1 // pred_check
      _
    $region67: #{tpu_custom_call.1} parent=1 // pred_check_branch
      %3137 = sbr.rel (0) target = $region69
    $region68: #{tpu_custom_call.1} parent=1 // pred_region
      %s3139 = ssub.s32 256, 256
      %3140 = vsyncadd [#allocation4], %s3139
      %s3141 = sshll.u32 [#allocation16], 4
      %s3142 = int_to_ptr.vmem [resolvable:$true] %s3141
      %3147 = dma.vmem_to_hbm [thread:$0]  %s3142, 256, %s8, [#allocation4], 128, 128, 8
    $region69: #{tpu_custom_call.1} parent=1 // pred_fallthru
      _
    // Predicated region
    $region70: #{tpu_custom_call.1} parent=1 // pred_check
      _
    $region71: #{tpu_custom_call.1} parent=1 // pred_check_branch
      %3149 = sbr.rel (0) target = $region73
    $region72: #{tpu_custom_call.1} parent=1 // pred_region
      %3150 = dma.done [#allocation4], 256
    $region73: #{tpu_custom_call.1} parent=1 // pred_fallthru
      _
    %3151 = vsyncpa [#allocation3], 1
    %3152 = vsyncpa [#allocation6], 1
    %3153 = vsyncpa [#allocation9], 1
    %3154 = vsyncpa [#allocation12], 1
    %3155 = vsyncpa [#allocation15], 1
    %3156 = vsyncpa [#allocation4], 1

</llo_original>
